<compile_context>
chip_gen: v7x
topology: tpu7x:2x2x1
jax: 0.10.0
libtpu: 0.0.40
codegen_flags: <defaults>
</compile_context>

<pallas_src>
import numpy as np
import jax
import jax.numpy as jnp
from jax.experimental import pallas as pl
from jax.experimental.pallas import tpu as pltpu


def _make_kernel(H, W, C, sf):
    CW = C * W
    sf2 = float(sf * sf)
    inv_hw = 1.0 / float(H * W)

    def kernel(alpha_ref, stk_ref, csh_ref, cwbd_ref, swbd_ref,
               shsum_ref, shtile_ref, swsum_ref, swtile_ref, out_ref):
        n = pl.program_id(0)
        a = alpha_ref[n]                      # per-image scalar (SMEM)

        CSH = csh_ref[...]                    # (2H, H)  = [cos ; -sin]
        CWB = cwbd_ref[...]                   # (CW, CW) block-diag cos
        SWB = swbd_ref[...]                   # (CW, CW) block-diag -sin
        SH_SUM = shsum_ref[...]               # (Hs, H)   0/1 row block-sum
        SH_TILE = shtile_ref[...]             # (H, Hs)   0/1 row tile
        SW_SUM = swsum_ref[...]               # (CW, CWs) 0/1 col block-sum
        SW_TILE = swtile_ref[...]             # (CWs, CW) 0/1 col tile

        z      = stk_ref[0]
        fk_re  = stk_ref[1]; fk_im  = stk_ref[2]
        fkc_re = stk_ref[3]; fkc_im = stk_ref[4]
        f2k_re = stk_ref[5]; f2k_im = stk_ref[6]
        fy_re  = stk_ref[7]; fy_im  = stk_ref[8]

        dot = lambda x, y: jnp.dot(x, y, preferred_element_type=jnp.float32)

        # ---- FR = FkCFy + fft2(alpha * z)   (all channels batched) ----
        zt = z * a                                   # (H, CW)
        M = dot(CSH, zt)                             # (2H, CW) = [CH@zt ; SH@zt]
        A = M[:H]
        B = M[H:]
        fz_re = dot(A, CWB) - dot(B, SWB)
        fz_im = dot(A, SWB) + dot(B, CWB)
        FR_re = fy_re + fz_re
        FR_im = fy_im + fz_im

        # ---- x1 = cmul(Fk, FR) ----
        x1_re = fk_re * FR_re - fk_im * FR_im
        x1_im = fk_re * FR_im + fk_im * FR_re

        # ---- block sums (= sf^2 * block means) via 0/1 matmuls ----
        FBR_re = dot(dot(SH_SUM, x1_re), SW_SUM)     # (Hs, C*Ws)
        FBR_im = dot(dot(SH_SUM, x1_im), SW_SUM)
        ivW_re = dot(dot(SH_SUM, f2k_re), SW_SUM)
        ivW_im = dot(dot(SH_SUM, f2k_im), SW_SUM)

        # ---- invWBR = cdiv(mean, csum(mean, a)) == sum / (sum + a*sf^2) ----
        c = ivW_re + a * sf2
        d = ivW_im
        inv = 1.0 / (c * c + d * d)
        wbr_re = (FBR_re * c + FBR_im * d) * inv
        wbr_im = (FBR_im * c - FBR_re * d) * inv

        # ---- FCBinvWBR = cmul(FkC, repeat(invWBR, sf, sf)) ----
        t_re = dot(dot(SH_TILE, wbr_re), SW_TILE)    # (H, CW)
        t_im = dot(dot(SH_TILE, wbr_im), SW_TILE)
        FCB_re = fkc_re * t_re - fkc_im * t_im
        FCB_im = fkc_re * t_im + fkc_im * t_re

        # ---- FX = (FR - FCB) / alpha, with 1/(H*W) of the ifft folded in ----
        s = inv_hw / a
        FX_re = (FR_re - FCB_re) * s
        FX_im = (FR_im - FCB_im) * s

        # ---- x = real(ifft2(FX)) via conjugate DFT (scale already applied) ----
        M2 = dot(CSH, FX_re)                         # [CH@FXr ; SH@FXr]
        M3 = dot(CSH, FX_im)                         # [CH@FXi ; SH@FXi]
        A2 = M2[:H] + M3[H:]
        B2 = M3[:H] - M2[H:]
        out_ref[...] = (dot(A2, CWB) + dot(B2, SWB)).astype(out_ref.dtype)

    return kernel


def refsr_pallas(z, Fk, FkC, F2k, FkCFy, alpha, sf):
    """z: (N,C,H,W) f32; Fk/FkC/F2k/FkCFy: (N,C,H,W,2); alpha: (N,1,1,1)."""
    f32 = jnp.float32
    N, C, H, W = z.shape
    assert H % sf == 0 and W % sf == 0
    Hs, Ws = H // sf, W // sf
    CW, CWs = C * W, C * Ws

    # ---- wrapper-side layout: (N,C,H,W) -> (N,H,C*W), planes stacked ----
    def to_lane(t):
        return jnp.transpose(t, (0, 2, 1, 3)).reshape(N, H, CW).astype(f32)

    planes = jnp.stack([
        to_lane(z),
        to_lane(Fk[..., 0]),    to_lane(Fk[..., 1]),
        to_lane(FkC[..., 0]),   to_lane(FkC[..., 1]),
        to_lane(F2k[..., 0]),   to_lane(F2k[..., 1]),
        to_lane(FkCFy[..., 0]), to_lane(FkCFy[..., 1]),
    ], axis=1)                                        # (N, 9, H, C*W)

    # ---- constant matrices (host-side numpy, exact modular angles) ----
    def dft_cos_sin(n):
        idx = np.arange(n)
        prod = np.outer(idx, idx) % n                 # modular reduction
        ang = 2.0 * np.pi * prod / n
        return np.cos(ang).astype(np.float32), (-np.sin(ang)).astype(np.float32)

    CH, SHm = dft_cos_sin(H)
    CWm, SWm = dft_cos_sin(W)
    CSH = np.concatenate([CH, SHm], axis=0)           # (2H, H)
    eyeC = np.eye(C, dtype=np.float32)
    CWBD = np.kron(eyeC, CWm)                         # (CW, CW) block-diag
    SWBD = np.kron(eyeC, SWm)
    ShSum = np.tile(np.eye(Hs, dtype=np.float32), (1, sf))        # (Hs, H)
    ShTile = np.ascontiguousarray(ShSum.T)                        # (H, Hs)
    Sw1 = np.tile(np.eye(Ws, dtype=np.float32), (1, sf))          # (Ws, W)
    SwSum = np.kron(eyeC, np.ascontiguousarray(Sw1.T))            # (CW, CWs)
    SwTile = np.kron(eyeC, Sw1)                                   # (CWs, CW)

    alpha_flat = alpha.reshape(N).astype(f32)         # one scalar per image

    def const_spec(shape):
        return pl.BlockSpec(shape, lambda n, _s=len(shape): (0,) * _s)

    in_specs = [
        pl.BlockSpec(memory_space=pltpu.MemorySpace.SMEM),          # alpha
        pl.BlockSpec((None, 9, H, CW), lambda n: (n, 0, 0, 0)),     # planes
        const_spec((2 * H, H)),      # CSH
        const_spec((CW, CW)),        # CWBD
        const_spec((CW, CW)),        # SWBD
        const_spec((Hs, H)),         # ShSum
        const_spec((H, Hs)),         # ShTile
        const_spec((CW, CWs)),       # SwSum
        const_spec((CWs, CW)),       # SwTile
    ]

    grid_spec = pltpu.PrefetchScalarGridSpec(
        num_scalar_prefetch=0,
        grid=(N,),
        in_specs=in_specs,
        out_specs=pl.BlockSpec((None, H, CW), lambda n: (n, 0, 0)),
    )

    kernel = _make_kernel(H, W, C, sf)
    out = pl.pallas_call(
        kernel,
        grid_spec=grid_spec,
        out_shape=jax.ShapeDtypeStruct((N, H, CW), f32),
        compiler_params=pltpu.CompilerParams(
            dimension_semantics=("parallel",)),
    )(alpha_flat, planes,
      jnp.asarray(CSH), jnp.asarray(CWBD), jnp.asarray(SWBD),
      jnp.asarray(ShSum), jnp.asarray(ShTile),
      jnp.asarray(SwSum), jnp.asarray(SwTile))

    # (N, H, C*W) -> (N, C, H, W)
    return jnp.transpose(out.reshape(N, H, C, W), (0, 2, 1, 3))


def refsr_ref(z, Fk, FkC, F2k, FkCFy, alpha, sf):
    """Pure-JAX reference mirroring the PyTorch forward (for validation)."""
    N, C, H, W = z.shape
    a = alpha
    Fz = jnp.fft.fft2(a * z)
    FR = (FkCFy[..., 0] + 1j * FkCFy[..., 1]) + Fz
    x1 = (Fk[..., 0] + 1j * Fk[..., 1]) * FR
    Hs, Ws = H // sf, W // sf

    def bmean(t):
        return t.reshape(N, C, sf, Hs, sf, Ws).mean(axis=(2, 4))

    FBR = bmean(x1)
    invW = bmean(F2k[..., 0] + 1j * F2k[..., 1])
    invWBR = FBR / (invW + a)
    FCB = (FkC[..., 0] + 1j * FkC[..., 1]) * jnp.tile(invWBR, (1, 1, sf, sf))
    FX = (FR - FCB) / a
    return jnp.real(jnp.fft.ifft2(FX))


if __name__ == "__main__":
    N, C, H, W, sf = 2, 4, 16, 16, 2
    key = jax.random.PRNGKey(0)
    k1, k2, k3, k4 = jax.random.split(key, 4)

    z = jax.random.normal(k1, (N, C, H, W), jnp.float32)
    fk = jax.random.normal(k2, (N, C, H, W, 2), jnp.float32)
    Fk = fk
    FkC = jnp.stack([fk[..., 0], -fk[..., 1]], axis=-1)               # conj(Fk)
    F2k = jnp.stack([fk[..., 0] ** 2 + fk[..., 1] ** 2,
                     jnp.zeros((N, C, H, W), jnp.float32)], axis=-1)  # |Fk|^2
    FkCFy = jax.random.normal(k3, (N, C, H, W, 2), jnp.float32)
    alpha = jax.random.uniform(k4, (N, 1, 1, 1), jnp.float32,
                               minval=0.3, maxval=1.0)

    out = refsr_pallas(z, Fk, FkC, F2k, FkCFy, alpha, sf)
    out = jax.block_until_ready(out)

    ref = refsr_ref(z, Fk, FkC, F2k, FkCFy, alpha, sf)
    denom = max(1.0, float(jnp.max(jnp.abs(ref))))
    err = float(jnp.max(jnp.abs(out - ref)))
    assert err < 5e-3 * denom, f"mismatch: max abs err {err} (scale {denom})"

    print("KERNEL_OK")
</pallas_src>

<mosaic_0001>
module attributes {stable_mosaic.version = 11 : i64} {
  func.func @kernel(%arg0: i32, %arg1: memref<2xf32, #tpu.memory_space<smem>>, %arg2: memref<1x9x16x64xf32, #tpu.memory_space<vmem>>, %arg3: memref<32x16xf32, #tpu.memory_space<vmem>>, %arg4: memref<64x64xf32, #tpu.memory_space<vmem>>, %arg5: memref<64x64xf32, #tpu.memory_space<vmem>>, %arg6: memref<8x16xf32, #tpu.memory_space<vmem>>, %arg7: memref<16x8xf32, #tpu.memory_space<vmem>>, %arg8: memref<64x32xf32, #tpu.memory_space<vmem>>, %arg9: memref<32x64xf32, #tpu.memory_space<vmem>>, %arg10: memref<1x16x64xf32, #tpu.memory_space<vmem>>) attributes {dimension_semantics = [#tpu.dimension_semantics<parallel>], iteration_bounds = array<i64: 2>, scalar_prefetch = 0 : i64, scratch_operands = 0 : i64, tpu.core_type = #tpu.core_type<tc>, window_params = [{transform_indices = @transform_0, window_bounds = array<i64: 2>}, {transform_indices = @transform_1, window_bounds = array<i64: 1, 9, 16, 64>}, {pipeline_mode = #tpu.pipeline_mode<synchronous>, transform_indices = @transform_2, window_bounds = array<i64: 32, 16>}, {pipeline_mode = #tpu.pipeline_mode<synchronous>, transform_indices = @transform_3, window_bounds = array<i64: 64, 64>}, {pipeline_mode = #tpu.pipeline_mode<synchronous>, transform_indices = @transform_4, window_bounds = array<i64: 64, 64>}, {pipeline_mode = #tpu.pipeline_mode<synchronous>, transform_indices = @transform_5, window_bounds = array<i64: 8, 16>}, {pipeline_mode = #tpu.pipeline_mode<synchronous>, transform_indices = @transform_6, window_bounds = array<i64: 16, 8>}, {pipeline_mode = #tpu.pipeline_mode<synchronous>, transform_indices = @transform_7, window_bounds = array<i64: 64, 32>}, {pipeline_mode = #tpu.pipeline_mode<synchronous>, transform_indices = @transform_8, window_bounds = array<i64: 32, 64>}, {transform_indices = @transform_9, window_bounds = array<i64: 1, 16, 64>}]} {
    %0 = arith.index_cast %arg0 : i32 to index
    %1 = memref.load %arg1[%0] : memref<2xf32, #tpu.memory_space<smem>>
    %c0 = arith.constant 0 : index
    %c0_0 = arith.constant 0 : index
    %2 = vector.load %arg3[%c0, %c0_0] : memref<32x16xf32, #tpu.memory_space<vmem>>, vector<32x16xf32>
    %c0_1 = arith.constant 0 : index
    %c0_2 = arith.constant 0 : index
    %3 = vector.load %arg4[%c0_1, %c0_2] : memref<64x64xf32, #tpu.memory_space<vmem>>, vector<64x64xf32>
    %c0_3 = arith.constant 0 : index
    %c0_4 = arith.constant 0 : index
    %4 = vector.load %arg5[%c0_3, %c0_4] : memref<64x64xf32, #tpu.memory_space<vmem>>, vector<64x64xf32>
    %c0_5 = arith.constant 0 : index
    %c0_6 = arith.constant 0 : index
    %5 = vector.load %arg6[%c0_5, %c0_6] : memref<8x16xf32, #tpu.memory_space<vmem>>, vector<8x16xf32>
    %c0_7 = arith.constant 0 : index
    %c0_8 = arith.constant 0 : index
    %6 = vector.load %arg7[%c0_7, %c0_8] : memref<16x8xf32, #tpu.memory_space<vmem>>, vector<16x8xf32>
    %c0_9 = arith.constant 0 : index
    %c0_10 = arith.constant 0 : index
    %7 = vector.load %arg8[%c0_9, %c0_10] : memref<64x32xf32, #tpu.memory_space<vmem>>, vector<64x32xf32>
    %c0_11 = arith.constant 0 : index
    %c0_12 = arith.constant 0 : index
    %8 = vector.load %arg9[%c0_11, %c0_12] : memref<32x64xf32, #tpu.memory_space<vmem>>, vector<32x64xf32>
    %c0_13 = arith.constant 0 : index
    %c0_14 = arith.constant 0 : index
    %c0_15 = arith.constant 0 : index
    %c0_16 = arith.constant 0 : index
    %9 = vector.load %arg2[%c0_13, %c0_14, %c0_15, %c0_16] : memref<1x9x16x64xf32, #tpu.memory_space<vmem>>, vector<1x1x16x64xf32>
    %10 = vector.shape_cast %9 : vector<1x1x16x64xf32> to vector<16x64xf32>
    %c0_17 = arith.constant 0 : index
    %c1 = arith.constant 1 : index
    %c0_18 = arith.constant 0 : index
    %c0_19 = arith.constant 0 : index
    %11 = vector.load %arg2[%c0_17, %c1, %c0_18, %c0_19] : memref<1x9x16x64xf32, #tpu.memory_space<vmem>>, vector<1x1x16x64xf32>
    %12 = vector.shape_cast %11 : vector<1x1x16x64xf32> to vector<16x64xf32>
    %c0_20 = arith.constant 0 : index
    %c2 = arith.constant 2 : index
    %c0_21 = arith.constant 0 : index
    %c0_22 = arith.constant 0 : index
    %13 = vector.load %arg2[%c0_20, %c2, %c0_21, %c0_22] : memref<1x9x16x64xf32, #tpu.memory_space<vmem>>, vector<1x1x16x64xf32>
    %14 = vector.shape_cast %13 : vector<1x1x16x64xf32> to vector<16x64xf32>
    %c0_23 = arith.constant 0 : index
    %c3 = arith.constant 3 : index
    %c0_24 = arith.constant 0 : index
    %c0_25 = arith.constant 0 : index
    %15 = vector.load %arg2[%c0_23, %c3, %c0_24, %c0_25] : memref<1x9x16x64xf32, #tpu.memory_space<vmem>>, vector<1x1x16x64xf32>
    %16 = vector.shape_cast %15 : vector<1x1x16x64xf32> to vector<16x64xf32>
    %c0_26 = arith.constant 0 : index
    %c4 = arith.constant 4 : index
    %c0_27 = arith.constant 0 : index
    %c0_28 = arith.constant 0 : index
    %17 = vector.load %arg2[%c0_26, %c4, %c0_27, %c0_28] : memref<1x9x16x64xf32, #tpu.memory_space<vmem>>, vector<1x1x16x64xf32>
    %18 = vector.shape_cast %17 : vector<1x1x16x64xf32> to vector<16x64xf32>
    %c0_29 = arith.constant 0 : index
    %c5 = arith.constant 5 : index
    %c0_30 = arith.constant 0 : index
    %c0_31 = arith.constant 0 : index
    %19 = vector.load %arg2[%c0_29, %c5, %c0_30, %c0_31] : memref<1x9x16x64xf32, #tpu.memory_space<vmem>>, vector<1x1x16x64xf32>
    %20 = vector.shape_cast %19 : vector<1x1x16x64xf32> to vector<16x64xf32>
    %c0_32 = arith.constant 0 : index
    %c6 = arith.constant 6 : index
    %c0_33 = arith.constant 0 : index
    %c0_34 = arith.constant 0 : index
    %21 = vector.load %arg2[%c0_32, %c6, %c0_33, %c0_34] : memref<1x9x16x64xf32, #tpu.memory_space<vmem>>, vector<1x1x16x64xf32>
    %22 = vector.shape_cast %21 : vector<1x1x16x64xf32> to vector<16x64xf32>
    %c0_35 = arith.constant 0 : index
    %c7 = arith.constant 7 : index
    %c0_36 = arith.constant 0 : index
    %c0_37 = arith.constant 0 : index
    %23 = vector.load %arg2[%c0_35, %c7, %c0_36, %c0_37] : memref<1x9x16x64xf32, #tpu.memory_space<vmem>>, vector<1x1x16x64xf32>
    %24 = vector.shape_cast %23 : vector<1x1x16x64xf32> to vector<16x64xf32>
    %c0_38 = arith.constant 0 : index
    %c8 = arith.constant 8 : index
    %c0_39 = arith.constant 0 : index
    %c0_40 = arith.constant 0 : index
    %25 = vector.load %arg2[%c0_38, %c8, %c0_39, %c0_40] : memref<1x9x16x64xf32, #tpu.memory_space<vmem>>, vector<1x1x16x64xf32>
    %26 = vector.shape_cast %25 : vector<1x1x16x64xf32> to vector<16x64xf32>
    %27 = vector.broadcast %1 : f32 to vector<16x64xf32>
    %28 = arith.mulf %10, %27 : vector<16x64xf32>
    %cst = arith.constant dense<0.000000e+00> : vector<32x64xf32>
    %29 = tpu.matmul %2, %28, %cst {dimension_numbers = #tpu.dot_dimension_numbers<[1], [0], [0], [1], [0, 0, 1, 1], [], []>} : vector<32x16xf32>, vector<16x64xf32>, vector<32x64xf32> -> vector<32x64xf32>
    %30 = vector.extract_strided_slice %29 {offsets = [0, 0], sizes = [16, 64], strides = [1, 1]} : vector<32x64xf32> to vector<16x64xf32>
    %31 = vector.extract_strided_slice %29 {offsets = [16, 0], sizes = [16, 64], strides = [1, 1]} : vector<32x64xf32> to vector<16x64xf32>
    %cst_41 = arith.constant dense<0.000000e+00> : vector<16x64xf32>
    %32 = tpu.matmul %30, %3, %cst_41 {dimension_numbers = #tpu.dot_dimension_numbers<[1], [0], [0], [1], [0, 0, 1, 1], [], []>} : vector<16x64xf32>, vector<64x64xf32>, vector<16x64xf32> -> vector<16x64xf32>
    %cst_42 = arith.constant dense<0.000000e+00> : vector<16x64xf32>
    %33 = tpu.matmul %31, %4, %cst_42 {dimension_numbers = #tpu.dot_dimension_numbers<[1], [0], [0], [1], [0, 0, 1, 1], [], []>} : vector<16x64xf32>, vector<64x64xf32>, vector<16x64xf32> -> vector<16x64xf32>
    %34 = arith.subf %32, %33 : vector<16x64xf32>
    %cst_43 = arith.constant dense<0.000000e+00> : vector<16x64xf32>
    %35 = tpu.matmul %30, %4, %cst_43 {dimension_numbers = #tpu.dot_dimension_numbers<[1], [0], [0], [1], [0, 0, 1, 1], [], []>} : vector<16x64xf32>, vector<64x64xf32>, vector<16x64xf32> -> vector<16x64xf32>
    %cst_44 = arith.constant dense<0.000000e+00> : vector<16x64xf32>
    %36 = tpu.matmul %31, %3, %cst_44 {dimension_numbers = #tpu.dot_dimension_numbers<[1], [0], [0], [1], [0, 0, 1, 1], [], []>} : vector<16x64xf32>, vector<64x64xf32>, vector<16x64xf32> -> vector<16x64xf32>
    %37 = arith.addf %35, %36 : vector<16x64xf32>
    %38 = arith.addf %24, %34 : vector<16x64xf32>
    %39 = arith.addf %26, %37 : vector<16x64xf32>
    %40 = arith.mulf %12, %38 : vector<16x64xf32>
    %41 = arith.mulf %14, %39 : vector<16x64xf32>
    %42 = arith.subf %40, %41 : vector<16x64xf32>
    %43 = arith.mulf %12, %39 : vector<16x64xf32>
    %44 = arith.mulf %14, %38 : vector<16x64xf32>
    %45 = arith.addf %43, %44 : vector<16x64xf32>
    %cst_45 = arith.constant dense<0.000000e+00> : vector<8x64xf32>
    %46 = tpu.matmul %5, %42, %cst_45 {dimension_numbers = #tpu.dot_dimension_numbers<[1], [0], [0], [1], [0, 0, 1, 1], [], []>} : vector<8x16xf32>, vector<16x64xf32>, vector<8x64xf32> -> vector<8x64xf32>
    %cst_46 = arith.constant dense<0.000000e+00> : vector<8x32xf32>
    %47 = tpu.matmul %46, %7, %cst_46 {dimension_numbers = #tpu.dot_dimension_numbers<[1], [0], [0], [1], [0, 0, 1, 1], [], []>} : vector<8x64xf32>, vector<64x32xf32>, vector<8x32xf32> -> vector<8x32xf32>
    %cst_47 = arith.constant dense<0.000000e+00> : vector<8x64xf32>
    %48 = tpu.matmul %5, %45, %cst_47 {dimension_numbers = #tpu.dot_dimension_numbers<[1], [0], [0], [1], [0, 0, 1, 1], [], []>} : vector<8x16xf32>, vector<16x64xf32>, vector<8x64xf32> -> vector<8x64xf32>
    %cst_48 = arith.constant dense<0.000000e+00> : vector<8x32xf32>
    %49 = tpu.matmul %48, %7, %cst_48 {dimension_numbers = #tpu.dot_dimension_numbers<[1], [0], [0], [1], [0, 0, 1, 1], [], []>} : vector<8x64xf32>, vector<64x32xf32>, vector<8x32xf32> -> vector<8x32xf32>
    %cst_49 = arith.constant dense<0.000000e+00> : vector<8x64xf32>
    %50 = tpu.matmul %5, %20, %cst_49 {dimension_numbers = #tpu.dot_dimension_numbers<[1], [0], [0], [1], [0, 0, 1, 1], [], []>} : vector<8x16xf32>, vector<16x64xf32>, vector<8x64xf32> -> vector<8x64xf32>
    %cst_50 = arith.constant dense<0.000000e+00> : vector<8x32xf32>
    %51 = tpu.matmul %50, %7, %cst_50 {dimension_numbers = #tpu.dot_dimension_numbers<[1], [0], [0], [1], [0, 0, 1, 1], [], []>} : vector<8x64xf32>, vector<64x32xf32>, vector<8x32xf32> -> vector<8x32xf32>
    %cst_51 = arith.constant dense<0.000000e+00> : vector<8x64xf32>
    %52 = tpu.matmul %5, %22, %cst_51 {dimension_numbers = #tpu.dot_dimension_numbers<[1], [0], [0], [1], [0, 0, 1, 1], [], []>} : vector<8x16xf32>, vector<16x64xf32>, vector<8x64xf32> -> vector<8x64xf32>
    %cst_52 = arith.constant dense<0.000000e+00> : vector<8x32xf32>
    %53 = tpu.matmul %52, %7, %cst_52 {dimension_numbers = #tpu.dot_dimension_numbers<[1], [0], [0], [1], [0, 0, 1, 1], [], []>} : vector<8x64xf32>, vector<64x32xf32>, vector<8x32xf32> -> vector<8x32xf32>
    %cst_53 = arith.constant 4.000000e+00 : f32
    %54 = arith.mulf %1, %cst_53 : f32
    %55 = vector.broadcast %54 : f32 to vector<8x32xf32>
    %56 = arith.addf %51, %55 : vector<8x32xf32>
    %57 = arith.mulf %56, %56 : vector<8x32xf32>
    %58 = arith.mulf %53, %53 : vector<8x32xf32>
    %59 = arith.addf %57, %58 : vector<8x32xf32>
    %cst_54 = arith.constant 1.000000e+00 : f32
    %60 = vector.broadcast %cst_54 : f32 to vector<8x32xf32>
    %61 = arith.divf %60, %59 : vector<8x32xf32>
    %62 = arith.mulf %47, %56 : vector<8x32xf32>
    %63 = arith.mulf %49, %53 : vector<8x32xf32>
    %64 = arith.addf %62, %63 : vector<8x32xf32>
    %65 = arith.mulf %64, %61 : vector<8x32xf32>
    %66 = arith.mulf %49, %56 : vector<8x32xf32>
    %67 = arith.mulf %47, %53 : vector<8x32xf32>
    %68 = arith.subf %66, %67 : vector<8x32xf32>
    %69 = arith.mulf %68, %61 : vector<8x32xf32>
    %cst_55 = arith.constant dense<0.000000e+00> : vector<16x32xf32>
    %70 = tpu.matmul %6, %65, %cst_55 {dimension_numbers = #tpu.dot_dimension_numbers<[1], [0], [0], [1], [0, 0, 1, 1], [], []>} : vector<16x8xf32>, vector<8x32xf32>, vector<16x32xf32> -> vector<16x32xf32>
    %cst_56 = arith.constant dense<0.000000e+00> : vector<16x64xf32>
    %71 = tpu.matmul %70, %8, %cst_56 {dimension_numbers = #tpu.dot_dimension_numbers<[1], [0], [0], [1], [0, 0, 1, 1], [], []>} : vector<16x32xf32>, vector<32x64xf32>, vector<16x64xf32> -> vector<16x64xf32>
    %cst_57 = arith.constant dense<0.000000e+00> : vector<16x32xf32>
    %72 = tpu.matmul %6, %69, %cst_57 {dimension_numbers = #tpu.dot_dimension_numbers<[1], [0], [0], [1], [0, 0, 1, 1], [], []>} : vector<16x8xf32>, vector<8x32xf32>, vector<16x32xf32> -> vector<16x32xf32>
    %cst_58 = arith.constant dense<0.000000e+00> : vector<16x64xf32>
    %73 = tpu.matmul %72, %8, %cst_58 {dimension_numbers = #tpu.dot_dimension_numbers<[1], [0], [0], [1], [0, 0, 1, 1], [], []>} : vector<16x32xf32>, vector<32x64xf32>, vector<16x64xf32> -> vector<16x64xf32>
    %74 = arith.mulf %16, %71 : vector<16x64xf32>
    %75 = arith.mulf %18, %73 : vector<16x64xf32>
    %76 = arith.subf %74, %75 : vector<16x64xf32>
    %77 = arith.mulf %16, %73 : vector<16x64xf32>
    %78 = arith.mulf %18, %71 : vector<16x64xf32>
    %79 = arith.addf %77, %78 : vector<16x64xf32>
    %cst_59 = arith.constant 3.906250e-03 : f32
    %80 = arith.divf %cst_59, %1 : f32
    %81 = arith.subf %38, %76 : vector<16x64xf32>
    %82 = vector.broadcast %80 : f32 to vector<16x64xf32>
    %83 = arith.mulf %81, %82 : vector<16x64xf32>
    %84 = arith.subf %39, %79 : vector<16x64xf32>
    %85 = vector.broadcast %80 : f32 to vector<16x64xf32>
    %86 = arith.mulf %84, %85 : vector<16x64xf32>
    %cst_60 = arith.constant dense<0.000000e+00> : vector<32x64xf32>
    %87 = tpu.matmul %2, %83, %cst_60 {dimension_numbers = #tpu.dot_dimension_numbers<[1], [0], [0], [1], [0, 0, 1, 1], [], []>} : vector<32x16xf32>, vector<16x64xf32>, vector<32x64xf32> -> vector<32x64xf32>
    %cst_61 = arith.constant dense<0.000000e+00> : vector<32x64xf32>
    %88 = tpu.matmul %2, %86, %cst_61 {dimension_numbers = #tpu.dot_dimension_numbers<[1], [0], [0], [1], [0, 0, 1, 1], [], []>} : vector<32x16xf32>, vector<16x64xf32>, vector<32x64xf32> -> vector<32x64xf32>
    %89 = vector.extract_strided_slice %87 {offsets = [0, 0], sizes = [16, 64], strides = [1, 1]} : vector<32x64xf32> to vector<16x64xf32>
    %90 = vector.extract_strided_slice %88 {offsets = [16, 0], sizes = [16, 64], strides = [1, 1]} : vector<32x64xf32> to vector<16x64xf32>
    %91 = arith.addf %89, %90 : vector<16x64xf32>
    %92 = vector.extract_strided_slice %88 {offsets = [0, 0], sizes = [16, 64], strides = [1, 1]} : vector<32x64xf32> to vector<16x64xf32>
    %93 = vector.extract_strided_slice %87 {offsets = [16, 0], sizes = [16, 64], strides = [1, 1]} : vector<32x64xf32> to vector<16x64xf32>
    %94 = arith.subf %92, %93 : vector<16x64xf32>
    %cst_62 = arith.constant dense<0.000000e+00> : vector<16x64xf32>
    %95 = tpu.matmul %91, %3, %cst_62 {dimension_numbers = #tpu.dot_dimension_numbers<[1], [0], [0], [1], [0, 0, 1, 1], [], []>} : vector<16x64xf32>, vector<64x64xf32>, vector<16x64xf32> -> vector<16x64xf32>
    %cst_63 = arith.constant dense<0.000000e+00> : vector<16x64xf32>
    %96 = tpu.matmul %94, %4, %cst_63 {dimension_numbers = #tpu.dot_dimension_numbers<[1], [0], [0], [1], [0, 0, 1, 1], [], []>} : vector<16x64xf32>, vector<64x64xf32>, vector<16x64xf32> -> vector<16x64xf32>
    %97 = arith.addf %95, %96 : vector<16x64xf32>
    %c0_64 = arith.constant 0 : index
    %c0_65 = arith.constant 0 : index
    %c0_66 = arith.constant 0 : index
    %98 = vector.load %arg10[%c0_64, %c0_65, %c0_66] : memref<1x16x64xf32, #tpu.memory_space<vmem>>, vector<1x16x64xf32>
    %99 = vector.shape_cast %98 : vector<1x16x64xf32> to vector<16x64xf32>
    %100 = vector.shape_cast %97 : vector<16x64xf32> to vector<1x16x64xf32>
    tpu.vector_store %arg10[%c0_64, %c0_65, %c0_66], %100 {strides = array<i32>} : memref<1x16x64xf32, #tpu.memory_space<vmem>>, vector<1x16x64xf32>,
    return
  }
  func.func @transform_0(%arg0: i32) -> i32 {
    %c0_i32 = arith.constant 0 : i32
    %c0_i32_0 = arith.constant 0 : i32
    return %c0_i32 : i32
  }
  func.func @transform_1(%arg0: i32) -> (i32, i32, i32, i32) {
    %c0_i32 = arith.constant 0 : i32
    %c0_i32_0 = arith.constant 0 : i32
    %c0_i32_1 = arith.constant 0 : i32
    %c0_i32_2 = arith.constant 0 : i32
    return %arg0, %c0_i32, %c0_i32_0, %c0_i32_1 : i32, i32, i32, i32
  }
  func.func @transform_2(%arg0: i32) -> (i32, i32) {
    %c0_i32 = arith.constant 0 : i32
    %c0_i32_0 = arith.constant 0 : i32
    %c0_i32_1 = arith.constant 0 : i32
    return %c0_i32, %c0_i32_0 : i32, i32
  }
  func.func @transform_3(%arg0: i32) -> (i32, i32) {
    %c0_i32 = arith.constant 0 : i32
    %c0_i32_0 = arith.constant 0 : i32
    %c0_i32_1 = arith.constant 0 : i32
    return %c0_i32, %c0_i32_0 : i32, i32
  }
  func.func @transform_4(%arg0: i32) -> (i32, i32) {
    %c0_i32 = arith.constant 0 : i32
    %c0_i32_0 = arith.constant 0 : i32
    %c0_i32_1 = arith.constant 0 : i32
    return %c0_i32, %c0_i32_0 : i32, i32
  }
  func.func @transform_5(%arg0: i32) -> (i32, i32) {
    %c0_i32 = arith.constant 0 : i32
    %c0_i32_0 = arith.constant 0 : i32
    %c0_i32_1 = arith.constant 0 : i32
    return %c0_i32, %c0_i32_0 : i32, i32
  }
  func.func @transform_6(%arg0: i32) -> (i32, i32) {
    %c0_i32 = arith.constant 0 : i32
    %c0_i32_0 = arith.constant 0 : i32
    %c0_i32_1 = arith.constant 0 : i32
    return %c0_i32, %c0_i32_0 : i32, i32
  }
  func.func @transform_7(%arg0: i32) -> (i32, i32) {
    %c0_i32 = arith.constant 0 : i32
    %c0_i32_0 = arith.constant 0 : i32
    %c0_i32_1 = arith.constant 0 : i32
    return %c0_i32, %c0_i32_0 : i32, i32
  }
  func.func @transform_8(%arg0: i32) -> (i32, i32) {
    %c0_i32 = arith.constant 0 : i32
    %c0_i32_0 = arith.constant 0 : i32
    %c0_i32_1 = arith.constant 0 : i32
    return %c0_i32, %c0_i32_0 : i32, i32
  }
  func.func @transform_9(%arg0: i32) -> (i32, i32, i32) {
    %c0_i32 = arith.constant 0 : i32
    %c0_i32_0 = arith.constant 0 : i32
    %c0_i32_1 = arith.constant 0 : i32
    return %arg0, %c0_i32, %c0_i32_0 : i32, i32, i32
  }
}

</mosaic_0001>

<llo_original>
// kernel: tpu_custom_call.1
$region0: #{tpu_custom_call.1}
  #allocation0 [shape = 'u32[]', space=smem, size = 0x4, offset = 0x4, fixed_abs, tag = 'smem constant byte address 0x4 - core index']
  #allocation1 [shape = 'u32[144,128]{1,0:T(1,128)}', space=vmem, size = 0x12000, scoped, tag = 'internal scratch']
  %s0 = inlined_call_operand.vmem [shape: f32[2], index: 0, kind: input, shape index: {}]
  %s1 = inlined_call_operand.hbm [shape: f32[2,9,16,64], index: 1, kind: input, shape index: {}]
  %s2 = inlined_call_operand.vmem [shape: f32[32,16], index: 2, kind: input, shape index: {}]
  %s3 = inlined_call_operand.vmem [shape: f32[64,64], index: 3, kind: input, shape index: {}]
  %s4 = inlined_call_operand.vmem [shape: f32[64,64], index: 4, kind: input, shape index: {}]
  %s5 = inlined_call_operand.hbm [shape: f32[8,16], index: 5, kind: input, shape index: {}]
  %s6 = inlined_call_operand.vmem [shape: f32[16,8], index: 6, kind: input, shape index: {}]
  %s7 = inlined_call_operand.vmem [shape: f32[64,32], index: 7, kind: input, shape index: {}]
  %s8 = inlined_call_operand.vmem [shape: f32[32,64], index: 8, kind: input, shape index: {}]
  %s9 = inlined_call_operand.hbm [shape: f32[2,16,64], index: 9, kind: output, shape index: {}]
  %s10 = sld [smem:[#allocation0]]
  $region81: #{tpu_custom_call.1} parent=0
    _
  %s12 = ssub.s32 1, %s10
  %s13 = scalar_select 0, %s12, %s10
  $region1: #{tpu_custom_call.1} parent=0
    #allocation2 [shape = 'u8[512]{0}', space=smem, size = 0x200, scoped, tag = 'input window, operand 0, single buffered']
    #allocation3 [shape = 's32[2]{0}', space=sflag, size = 0x8, scoped, tag = 'scoped memory for tpu_custom_call.1']
    #allocation4 [shape = 's32[2]{0}', space=sflag, size = 0x8, scoped, tag = 'scoped memory for tpu_custom_call.1']
    #allocation5 [shape = 's32[2]{0}', space=sflag, size = 0x8, scoped, tag = 'scoped memory for tpu_custom_call.1']
    #allocation6 [shape = 'u8[147456]{0}', space=vmem, size = 0x24000, scoped, tag = 'input window, operand 1']
    #allocation7 [shape = 'u8[4096]{0}', space=vmem, size = 0x1000, scoped, tag = 'input window, operand 5, single buffered']
    #allocation8 [shape = 's32[1]{0}', space=sflag, size = 0x4, scoped, tag = 'scoped memory for tpu_custom_call.1']
    #allocation9 [shape = 'u8[16384]{0}', space=vmem, size = 0x4000, scoped, tag = 'output window, operand 0']
    %14 = vsyncpa [#allocation5], 0
    %15 = vsyncpa [#allocation3], 0
    %s16 = scalar_lea.sflag [#allocation3], 1
    %17 = vsyncpa %s16, 0
    %18 = vsyncpa [#allocation8], 0
    %19 = vsyncpa [#allocation4], 0
    %s20 = scalar_lea.sflag [#allocation4], 1
    %21 = vsyncpa %s20, 0
    loop: start=0, step=1, limit=4
    $region2: #{tpu_custom_call.1} parent=1 // loop_pre_header
      _
    $region3: #{tpu_custom_call.1} parent=1 // loop_header
      %s23 = sphi 0, %s27
      %p24 = scmp.ge.s32.totalorder %s23, 4
      %s31 = sphi 0, %s31
      %s33 = sphi 0, %s31
      %s34 = sphi 0, %s33
      %s48 = sphi 0, %s34
      %s54 = sphi 0, %s56
      %s57 = sphi 0, %s54
      %s58 = sphi 0, %s57
      %s74 = sphi 0, %s58
      %s78 = sphi 0, %s78
      %s80 = sphi 0, %s78
      %s81 = sphi 0, %s80
      %s95 = sphi 0, %s81
      %s99 = sphi 0, %s99
      %s101 = sphi 0, %s99
      %s102 = sphi 0, %s101
      %s116 = sphi 0, %s102
      %s120 = sphi 0, %s120
      %s122 = sphi 0, %s120
      %s123 = sphi 0, %s122
      %s137 = sphi 0, %s123
      %s141 = sphi 0, %s141
      %s143 = sphi 0, %s141
      %s144 = sphi 0, %s143
      %s158 = sphi 0, %s144
      %s162 = sphi 0, %s162
      %s164 = sphi 0, %s162
      %s165 = sphi 0, %s164
      %s179 = sphi 0, %s165
      %s183 = sphi 0, %s183
      %s185 = sphi 0, %s183
      %s186 = sphi 0, %s185
      %s200 = sphi 0, %s186
      %s204 = sphi 0, %s204
      %s206 = sphi 0, %s204
      %s207 = sphi 0, %s206
      %s221 = sphi 0, %s207
      %s227 = sphi 0, %s229
      %s230 = sphi 0, %s227
      %s231 = sphi 0, %s230
      %s247 = sphi 0, %s231
    $region4: #{tpu_custom_call.1} parent=1 // loop_header_branch
      %26 = sbr.rel (%p24) target = $region8
    $region5: #{tpu_custom_call.1} parent=1 // loop_body
      %s28 = ssub.s32 %s23, 1
      %s29 = ssub.s32 %s23, 2
      %s30 = sadd.s32 %s23, 1
      %s32 = sadd.s32 %s31, 1
      %p35 = scmp.eq.s32.totalorder %s23, 1
      %p36 = scmp.ne.s32.totalorder %s31, %s33
      %p37 = scmp.eq.s32.totalorder %s23, 0
      %p38 = por %p36, %p37
      %p39 = scmp.ne.s32.totalorder %s31, %s33
      %p40 = scmp.eq.s32.totalorder %s28, 1
      %p41 = por %p39, %p40
      %p42 = scmp.ne.s32.totalorder %s33, %s34
      %p43 = scmp.eq.s32.totalorder %s28, 0
      %p44 = por %p42, %p43
      %p45 = scmp.ne.s32.totalorder %s33, %s34
      %p46 = scmp.eq.s32.totalorder %s29, 1
      %p47 = por %p45, %p46
      %p49 = scmp.ne.s32.totalorder %s34, %s48
      %p50 = scmp.eq.s32.totalorder %s29, 0
      %p51 = por %p49, %p50
      %s52 = ssub.s32 %s23, %s30
      %p53 = scmp.eq.s32.totalorder %s52, 0
      %s55 = sadd.s32 %s54, 1
      %s56 = scalar_select %p53, %s54, %s55
      %p59 = pneg %p53
      %p60 = scmp.eq.s32.totalorder %s23, 1
      %p61 = por %p59, %p60
      %p62 = scmp.ne.s32.totalorder %s54, %s57
      %p63 = scmp.eq.s32.totalorder %s23, 0
      %p64 = por %p62, %p63
      %p65 = scmp.ne.s32.totalorder %s54, %s57
      %p66 = scmp.eq.s32.totalorder %s28, 1
      %p67 = por %p65, %p66
      %p68 = scmp.ne.s32.totalorder %s57, %s58
      %p69 = scmp.eq.s32.totalorder %s28, 0
      %p70 = por %p68, %p69
      %p71 = scmp.ne.s32.totalorder %s57, %s58
      %p72 = scmp.eq.s32.totalorder %s29, 1
      %p73 = por %p71, %p72
      %p75 = scmp.ne.s32.totalorder %s58, %s74
      %p76 = scmp.eq.s32.totalorder %s29, 0
      %p77 = por %p75, %p76
      %s79 = sadd.s32 %s78, 1
      %p82 = scmp.eq.s32.totalorder %s23, 1
      %p83 = scmp.ne.s32.totalorder %s78, %s80
      %p84 = scmp.eq.s32.totalorder %s23, 0
      %p85 = por %p83, %p84
      %p86 = scmp.ne.s32.totalorder %s78, %s80
      %p87 = scmp.eq.s32.totalorder %s28, 1
      %p88 = por %p86, %p87
      %p89 = scmp.ne.s32.totalorder %s80, %s81
      %p90 = scmp.eq.s32.totalorder %s28, 0
      %p91 = por %p89, %p90
      %p92 = scmp.ne.s32.totalorder %s80, %s81
      %p93 = scmp.eq.s32.totalorder %s29, 1
      %p94 = por %p92, %p93
      %p96 = scmp.ne.s32.totalorder %s81, %s95
      %p97 = scmp.eq.s32.totalorder %s29, 0
      %p98 = por %p96, %p97
      %s100 = sadd.s32 %s99, 1
      %p103 = scmp.eq.s32.totalorder %s23, 1
      %p104 = scmp.ne.s32.totalorder %s99, %s101
      %p105 = scmp.eq.s32.totalorder %s23, 0
      %p106 = por %p104, %p105
      %p107 = scmp.ne.s32.totalorder %s99, %s101
      %p108 = scmp.eq.s32.totalorder %s28, 1
      %p109 = por %p107, %p108
      %p110 = scmp.ne.s32.totalorder %s101, %s102
      %p111 = scmp.eq.s32.totalorder %s28, 0
      %p112 = por %p110, %p111
      %p113 = scmp.ne.s32.totalorder %s101, %s102
      %p114 = scmp.eq.s32.totalorder %s29, 1
      %p115 = por %p113, %p114
      %p117 = scmp.ne.s32.totalorder %s102, %s116
      %p118 = scmp.eq.s32.totalorder %s29, 0
      %p119 = por %p117, %p118
      %s121 = sadd.s32 %s120, 1
      %p124 = scmp.eq.s32.totalorder %s23, 1
      %p125 = scmp.ne.s32.totalorder %s120, %s122
      %p126 = scmp.eq.s32.totalorder %s23, 0
      %p127 = por %p125, %p126
      %p128 = scmp.ne.s32.totalorder %s120, %s122
      %p129 = scmp.eq.s32.totalorder %s28, 1
      %p130 = por %p128, %p129
      %p131 = scmp.ne.s32.totalorder %s122, %s123
      %p132 = scmp.eq.s32.totalorder %s28, 0
      %p133 = por %p131, %p132
      %p134 = scmp.ne.s32.totalorder %s122, %s123
      %p135 = scmp.eq.s32.totalorder %s29, 1
      %p136 = por %p134, %p135
      %p138 = scmp.ne.s32.totalorder %s123, %s137
      %p139 = scmp.eq.s32.totalorder %s29, 0
      %p140 = por %p138, %p139
      %s142 = sadd.s32 %s141, 1
      %p145 = scmp.eq.s32.totalorder %s23, 1
      %p146 = scmp.ne.s32.totalorder %s141, %s143
      %p147 = scmp.eq.s32.totalorder %s23, 0
      %p148 = por %p146, %p147
      %p149 = scmp.ne.s32.totalorder %s141, %s143
      %p150 = scmp.eq.s32.totalorder %s28, 1
      %p151 = por %p149, %p150
      %p152 = scmp.ne.s32.totalorder %s143, %s144
      %p153 = scmp.eq.s32.totalorder %s28, 0
      %p154 = por %p152, %p153
      %p155 = scmp.ne.s32.totalorder %s143, %s144
      %p156 = scmp.eq.s32.totalorder %s29, 1
      %p157 = por %p155, %p156
      %p159 = scmp.ne.s32.totalorder %s144, %s158
      %p160 = scmp.eq.s32.totalorder %s29, 0
      %p161 = por %p159, %p160
      %s163 = sadd.s32 %s162, 1
      %p166 = scmp.eq.s32.totalorder %s23, 1
      %p167 = scmp.ne.s32.totalorder %s162, %s164
      %p168 = scmp.eq.s32.totalorder %s23, 0
      %p169 = por %p167, %p168
      %p170 = scmp.ne.s32.totalorder %s162, %s164
      %p171 = scmp.eq.s32.totalorder %s28, 1
      %p172 = por %p170, %p171
      %p173 = scmp.ne.s32.totalorder %s164, %s165
      %p174 = scmp.eq.s32.totalorder %s28, 0
      %p175 = por %p173, %p174
      %p176 = scmp.ne.s32.totalorder %s164, %s165
      %p177 = scmp.eq.s32.totalorder %s29, 1
      %p178 = por %p176, %p177
      %p180 = scmp.ne.s32.totalorder %s165, %s179
      %p181 = scmp.eq.s32.totalorder %s29, 0
      %p182 = por %p180, %p181
      %s184 = sadd.s32 %s183, 1
      %p187 = scmp.eq.s32.totalorder %s23, 1
      %p188 = scmp.ne.s32.totalorder %s183, %s185
      %p189 = scmp.eq.s32.totalorder %s23, 0
      %p190 = por %p188, %p189
      %p191 = scmp.ne.s32.totalorder %s183, %s185
      %p192 = scmp.eq.s32.totalorder %s28, 1
      %p193 = por %p191, %p192
      %p194 = scmp.ne.s32.totalorder %s185, %s186
      %p195 = scmp.eq.s32.totalorder %s28, 0
      %p196 = por %p194, %p195
      %p197 = scmp.ne.s32.totalorder %s185, %s186
      %p198 = scmp.eq.s32.totalorder %s29, 1
      %p199 = por %p197, %p198
      %p201 = scmp.ne.s32.totalorder %s186, %s200
      %p202 = scmp.eq.s32.totalorder %s29, 0
      %p203 = por %p201, %p202
      %s205 = sadd.s32 %s204, 1
      %p208 = scmp.eq.s32.totalorder %s23, 1
      %p209 = scmp.ne.s32.totalorder %s204, %s206
      %p210 = scmp.eq.s32.totalorder %s23, 0
      %p211 = por %p209, %p210
      %p212 = scmp.ne.s32.totalorder %s204, %s206
      %p213 = scmp.eq.s32.totalorder %s28, 1
      %p214 = por %p212, %p213
      %p215 = scmp.ne.s32.totalorder %s206, %s207
      %p216 = scmp.eq.s32.totalorder %s28, 0
      %p217 = por %p215, %p216
      %p218 = scmp.ne.s32.totalorder %s206, %s207
      %p219 = scmp.eq.s32.totalorder %s29, 1
      %p220 = por %p218, %p219
      %p222 = scmp.ne.s32.totalorder %s207, %s221
      %p223 = scmp.eq.s32.totalorder %s29, 0
      %p224 = por %p222, %p223
      %s225 = ssub.s32 %s23, %s30
      %p226 = scmp.eq.s32.totalorder %s225, 0
      %s228 = sadd.s32 %s227, 1
      %s229 = scalar_select %p226, %s227, %s228
      %p232 = pneg %p226
      %p233 = scmp.eq.s32.totalorder %s23, 1
      %p234 = por %p232, %p233
      %p235 = scmp.ne.s32.totalorder %s227, %s230
      %p236 = scmp.eq.s32.totalorder %s23, 0
      %p237 = por %p235, %p236
      %p238 = scmp.ne.s32.totalorder %s227, %s230
      %p239 = scmp.eq.s32.totalorder %s28, 1
      %p240 = por %p238, %p239
      %p241 = scmp.ne.s32.totalorder %s230, %s231
      %p242 = scmp.eq.s32.totalorder %s28, 0
      %p243 = por %p241, %p242
      %p244 = scmp.ne.s32.totalorder %s230, %s231
      %p245 = scmp.eq.s32.totalorder %s29, 1
      %p246 = por %p244, %p245
      %p248 = scmp.ne.s32.totalorder %s231, %s247
      %p249 = scmp.eq.s32.totalorder %s29, 0
      %p250 = por %p248, %p249
      %p251 = scmp.le.s32.totalorder 1, %s23
      %p252 = scmp.lt.s32.totalorder %s23, 3
      %p253 = pnand %p251, %p252
      %p254 = pneg %p253
      // Predicated region
      $region9: #{tpu_custom_call.1} parent=5 // pred_check
        _
      $region10: #{tpu_custom_call.1} parent=5 // pred_check_branch
        %256 = sbr.rel (%p253) target = $region12
      $region11: #{tpu_custom_call.1} parent=5 // pred_region
        %s257 = ssub.s32 %s23, 1
        // Predicated region
        $region13: #{tpu_custom_call.1} parent=11 // pred_check
          %p258 = pneg %p44
        $region14: #{tpu_custom_call.1} parent=11 // pred_check_branch
          %260 = sbr.rel (%p258) target = $region16
        $region15: #{tpu_custom_call.1} parent=11 // pred_region
          %s262 = ssub.s32 16, 16
          %263 = vsyncadd [#allocation5], %s262
          %s265 = sshll.u32 %s0, 4
          %s266 = int_to_ptr.vmem [resolvable:$true] %s265
          %268 = dma.vmem_to_smem %s266, 16, [#allocation2], [#allocation5]
        $region16: #{tpu_custom_call.1} parent=11 // pred_fallthru
          _
        // Predicated region
        $region17: #{tpu_custom_call.1} parent=11 // pred_check
          %p269 = pneg %p91
        $region18: #{tpu_custom_call.1} parent=11 // pred_check_branch
          %271 = sbr.rel (%p269) target = $region20
        $region19: #{tpu_custom_call.1} parent=11 // pred_region
          _
        $region20: #{tpu_custom_call.1} parent=11 // pred_fallthru
          _
        // Predicated region
        $region21: #{tpu_custom_call.1} parent=11 // pred_check
          %p272 = pneg %p112
        $region22: #{tpu_custom_call.1} parent=11 // pred_check_branch
          %274 = sbr.rel (%p272) target = $region24
        $region23: #{tpu_custom_call.1} parent=11 // pred_region
          _
        $region24: #{tpu_custom_call.1} parent=11 // pred_fallthru
          _
        // Predicated region
        $region25: #{tpu_custom_call.1} parent=11 // pred_check
          %p275 = pneg %p133
        $region26: #{tpu_custom_call.1} parent=11 // pred_check_branch
          %277 = sbr.rel (%p275) target = $region28
        $region27: #{tpu_custom_call.1} parent=11 // pred_region
          _
        $region28: #{tpu_custom_call.1} parent=11 // pred_fallthru
          _
        // Predicated region
        $region29: #{tpu_custom_call.1} parent=11 // pred_check
          %p278 = pneg %p154
        $region30: #{tpu_custom_call.1} parent=11 // pred_check_branch
          %280 = sbr.rel (%p278) target = $region32
        $region31: #{tpu_custom_call.1} parent=11 // pred_region
          %s282 = ssub.s32 128, 128
          %283 = vsyncadd [#allocation8], %s282
          %s285 = sshll.u32 [#allocation7], 4
          %s286 = int_to_ptr.vmem [resolvable:$true] %s285
          %288 = dma.hbm_to_vmem [thread:$0]  %s5, 128, %s286, [#allocation8]
        $region32: #{tpu_custom_call.1} parent=11 // pred_fallthru
          _
        // Predicated region
        $region33: #{tpu_custom_call.1} parent=11 // pred_check
          %p289 = pneg %p175
        $region34: #{tpu_custom_call.1} parent=11 // pred_check_branch
          %291 = sbr.rel (%p289) target = $region36
        $region35: #{tpu_custom_call.1} parent=11 // pred_region
          _
        $region36: #{tpu_custom_call.1} parent=11 // pred_fallthru
          _
        // Predicated region
        $region37: #{tpu_custom_call.1} parent=11 // pred_check
          %p292 = pneg %p196
        $region38: #{tpu_custom_call.1} parent=11 // pred_check_branch
          %294 = sbr.rel (%p292) target = $region40
        $region39: #{tpu_custom_call.1} parent=11 // pred_region
          _
        $region40: #{tpu_custom_call.1} parent=11 // pred_fallthru
          _
        // Predicated region
        $region41: #{tpu_custom_call.1} parent=11 // pred_check
          %p295 = pneg %p217
        $region42: #{tpu_custom_call.1} parent=11 // pred_check_branch
          %297 = sbr.rel (%p295) target = $region44
        $region43: #{tpu_custom_call.1} parent=11 // pred_region
          _
        $region44: #{tpu_custom_call.1} parent=11 // pred_fallthru
          _
      $region12: #{tpu_custom_call.1} parent=5 // pred_fallthru
        _
      %p298 = scmp.lt.s32.totalorder %s23, 2
      // Predicated region
      $region45: #{tpu_custom_call.1} parent=5 // pred_check
        %p299 = pneg %p298
      $region46: #{tpu_custom_call.1} parent=5 // pred_check_branch
        %301 = sbr.rel (%p299) target = $region48
      $region47: #{tpu_custom_call.1} parent=5 // pred_region
        // Predicated region
        $region49: #{tpu_custom_call.1} parent=47 // pred_check
          %p302 = pneg %p64
        $region50: #{tpu_custom_call.1} parent=47 // pred_check_branch
          %304 = sbr.rel (%p302) target = $region52
        $region51: #{tpu_custom_call.1} parent=47 // pred_region
          %s305 = sand.u32 %s54, 1
          %s306 = scalar_lea.sflag [#allocation3], %s305
          %s307 = sand.u32 %s54, 1
          %s308 = smul.addr %s307, 144
          %s309 = scalar_lea.vmem [#allocation6], %s308
          %s311 = ssub.s32 2304, 2304
          %312 = vsyncadd %s306, %s311
          %s313 = smul.addr %s23, 18
          %s314 = smul.addr %s313, 128
          %s315 = scalar_lea.hbm %s1, %s314
          %s316 = sshll.u32 %s309, 4
          %s317 = int_to_ptr.vmem [resolvable:$true] %s316
          %322 = dma.hbm_to_vmem [thread:$0]  %s315, 2304, %s317, %s306, 128, 128, 8
        $region52: #{tpu_custom_call.1} parent=47 // pred_fallthru
          _
      $region48: #{tpu_custom_call.1} parent=5 // pred_fallthru
        _
      %p323 = scmp.le.s32.totalorder 1, %s23
      %p324 = scmp.lt.s32.totalorder %s23, 3
      %p325 = pnand %p323, %p324
      %p326 = pneg %p325
      // Predicated region
      $region53: #{tpu_custom_call.1} parent=5 // pred_check
        _
      $region54: #{tpu_custom_call.1} parent=5 // pred_check_branch
        %328 = sbr.rel (%p325) target = $region56
      $region55: #{tpu_custom_call.1} parent=5 // pred_region
        %s329 = ssub.s32 %s23, 1
        // Predicated region
        $region57: #{tpu_custom_call.1} parent=55 // pred_check
          %p330 = pneg %p44
        $region58: #{tpu_custom_call.1} parent=55 // pred_check_branch
          %332 = sbr.rel (%p330) target = $region60
        $region59: #{tpu_custom_call.1} parent=55 // pred_region
          %333 = dma.done [#allocation5], 16
        $region60: #{tpu_custom_call.1} parent=55 // pred_fallthru
          _
        %s334 = sand.u32 %s57, 1
        %s335 = scalar_lea.sflag [#allocation3], %s334
        %s336 = sand.u32 %s57, 1
        %s337 = smul.addr %s336, 144
        %s338 = scalar_lea.vmem [#allocation6], %s337
        // Predicated region
        $region61: #{tpu_custom_call.1} parent=55 // pred_check
          %p339 = pneg %p70
        $region62: #{tpu_custom_call.1} parent=55 // pred_check_branch
          %341 = sbr.rel (%p339) target = $region64
        $region63: #{tpu_custom_call.1} parent=55 // pred_region
          %342 = dma.done %s335, 2304
        $region64: #{tpu_custom_call.1} parent=55 // pred_fallthru
          _
        // Predicated region
        $region65: #{tpu_custom_call.1} parent=55 // pred_check
          %p343 = pneg %p154
        $region66: #{tpu_custom_call.1} parent=55 // pred_check_branch
          %345 = sbr.rel (%p343) target = $region68
        $region67: #{tpu_custom_call.1} parent=55 // pred_region
          %346 = dma.done [#allocation8], 128
        $region68: #{tpu_custom_call.1} parent=55 // pred_fallthru
          _
        %347 = sfence
        %p348 = pneg %p44
        %p349 = pneg %p41
        %s350 = sand.u32 %s57, 1
        %s351 = scalar_lea.sflag [#allocation3], %s350
        %s352 = sand.u32 %s57, 1
        %s353 = smul.addr %s352, 144
        %s354 = scalar_lea.vmem [#allocation6], %s353
        %p355 = pneg %p70
        %p356 = pneg %p67
        %p357 = pneg %p91
        %p358 = pneg %p88
        %p359 = pneg %p112
        %p360 = pneg %p109
        %p361 = pneg %p133
        %p362 = pneg %p130
        %p363 = pneg %p154
        %p364 = pneg %p151
        %p365 = pneg %p175
        %p366 = pneg %p172
        %p367 = pneg %p196
        %p368 = pneg %p193
        %p369 = pneg %p217
        %p370 = pneg %p214
        %p371 = pneg %p243
        %p372 = pneg %p240
        %s373 = sand.u32 %s230, 1
        %s374 = scalar_lea.sflag [#allocation4], %s373
        %s375 = sand.u32 %s230, 1
        %s376 = smul.addr %s375, 16
        %s377 = scalar_lea.vmem [#allocation9], %s376
        %s378 = sld [smem:[#allocation2 + %s28]]
        %v379 = vld [vmem:[%s2] sm:$0xff]
        %v380 = vld [vmem:[%s2 + $0x8] sm:$0xff]
        %v381 = vld [vmem:[%s2 + $0x10] sm:$0xff]
        %v382 = vld [vmem:[%s2 + $0x18] sm:$0xff]
        %v383 = vld [vmem:[%s3] sm:$0xff]
        %v384 = vld [vmem:[%s3 + $0x8] sm:$0xff]
        %v385 = vld [vmem:[%s3 + $0x10] sm:$0xff]
        %v386 = vld [vmem:[%s3 + $0x18] sm:$0xff]
        %v387 = vld [vmem:[%s3 + $0x20] sm:$0xff]
        %v388 = vld [vmem:[%s3 + $0x28] sm:$0xff]
        %v389 = vld [vmem:[%s3 + $0x30] sm:$0xff]
        %v390 = vld [vmem:[%s3 + $0x38] sm:$0xff]
        %v391 = vld [vmem:[%s4] sm:$0xff]
        %v392 = vld [vmem:[%s4 + $0x8] sm:$0xff]
        %v393 = vld [vmem:[%s4 + $0x10] sm:$0xff]
        %v394 = vld [vmem:[%s4 + $0x18] sm:$0xff]
        %v395 = vld [vmem:[%s4 + $0x20] sm:$0xff]
        %v396 = vld [vmem:[%s4 + $0x28] sm:$0xff]
        %v397 = vld [vmem:[%s4 + $0x30] sm:$0xff]
        %v398 = vld [vmem:[%s4 + $0x38] sm:$0xff]
        %v399 = vld [vmem:[#allocation7] sm:$0xff]
        %v400 = vld [vmem:[%s6] sm:$0xff]
        %v401 = vld [vmem:[%s6 + $0x8] sm:$0xff]
        %v402 = vld [vmem:[%s7] sm:$0xff]
        %v403 = vld [vmem:[%s7 + $0x8] sm:$0xff]
        %v404 = vld [vmem:[%s7 + $0x10] sm:$0xff]
        %v405 = vld [vmem:[%s7 + $0x18] sm:$0xff]
        %v406 = vld [vmem:[%s7 + $0x20] sm:$0xff]
        %v407 = vld [vmem:[%s7 + $0x28] sm:$0xff]
        %v408 = vld [vmem:[%s7 + $0x30] sm:$0xff]
        %v409 = vld [vmem:[%s7 + $0x38] sm:$0xff]
        %v410 = vld [vmem:[%s8] sm:$0xff]
        %v411 = vld [vmem:[%s8 + $0x8] sm:$0xff]
        %v412 = vld [vmem:[%s8 + $0x10] sm:$0xff]
        %v413 = vld [vmem:[%s8 + $0x18] sm:$0xff]
        %v414 = vld [vmem:[%s338] sm:$0xff]
        %v415 = vld [vmem:[%s338 + $0x8] sm:$0xff]
        %s416 = scalar_lea.vmem %s338, 16 [#allocation6]
        %v417 = vld [vmem:[%s416] sm:$0xff]
        %v418 = vld [vmem:[%s416 + $0x8] sm:$0xff]
        %s419 = scalar_lea.vmem %s338, 32 [#allocation6]
        %v420 = vld [vmem:[%s419] sm:$0xff]
        %v421 = vld [vmem:[%s419 + $0x8] sm:$0xff]
        %s422 = scalar_lea.vmem %s338, 48 [#allocation6]
        %v423 = vld [vmem:[%s422] sm:$0xff]
        %v424 = vld [vmem:[%s422 + $0x8] sm:$0xff]
        %s425 = scalar_lea.vmem %s338, 64 [#allocation6]
        %v426 = vld [vmem:[%s425] sm:$0xff]
        %v427 = vld [vmem:[%s425 + $0x8] sm:$0xff]
        %s428 = scalar_lea.vmem %s338, 80 [#allocation6]
        %v429 = vld [vmem:[%s428] sm:$0xff]
        %v430 = vld [vmem:[%s428 + $0x8] sm:$0xff]
        %s431 = scalar_lea.vmem %s338, 96 [#allocation6]
        %v432 = vld [vmem:[%s431] sm:$0xff]
        %v433 = vld [vmem:[%s431 + $0x8] sm:$0xff]
        %s434 = scalar_lea.vmem %s338, 112 [#allocation6]
        %v435 = vld [vmem:[%s434] sm:$0xff]
        %v436 = vld [vmem:[%s434 + $0x8] sm:$0xff]
        %s437 = scalar_lea.vmem %s338, 128 [#allocation6]
        %v438 = vld [vmem:[%s437] sm:$0xff]
        %v439 = vld [vmem:[%s437 + $0x8] sm:$0xff]
        %v440 = vstv %s378
        %v441 = vmul.f32 %v414, %v440
        %v442 = vmul.f32 %v415, %v440
        %vm443 = vcmask 130048
        %v445 = vsel %vm443, %v379, 0
        %v448 = vsel %vm443, %v380, 0
        %v451 = vsel %vm443, %v381, 0
        %v454 = vsel %vm443, %v382, 0
        %456 = vmatprep.subr.mxu0 0.0
        %457 = vmatpush1.msra.mxu0 %v441
        %458 = vmatprep.subr.mxu0 0.0
        %459 = vmatpush1.msra.mxu0 %v442
        %460 = vmatprep.subr.mxu0 0.0
        %461 = vmatpush1.msra.mxu0 0.0
        %462 = vmatprep.subr.mxu0 0.0
        %463 = vmatpush1.msra.mxu0 0.0
        %464 = vmatprep.subr.mxu0 0.0
        %465 = vmatpush1.msra.mxu0 0.0
        %466 = vmatprep.subr.mxu0 0.0
        %467 = vmatpush1.msra.mxu0 0.0
        %468 = vmatprep.subr.mxu0 0.0
        %469 = vmatpush1.msra.mxu0 0.0
        %470 = vmatprep.subr.mxu0 0.0
        %471 = vmatpush1.msra.mxu0 0.0
        %472 = vmatprep.subr.mxu0 0.0
        %473 = vmatpush1.msra.mxu0 0.0
        %474 = vmatprep.subr.mxu0 0.0
        %475 = vmatpush1.msra.mxu0 0.0
        %476 = vmatprep.subr.mxu0 0.0
        %477 = vmatpush1.msra.mxu0 0.0
        %478 = vmatprep.subr.mxu0 0.0
        %479 = vmatpush1.msra.mxu0 0.0
        %480 = vmatprep.subr.mxu0 0.0
        %481 = vmatpush1.msra.mxu0 0.0
        %482 = vmatprep.subr.mxu0 0.0
        %483 = vmatpush1.msra.mxu0 0.0
        %484 = vmatprep.subr.mxu0 0.0
        %485 = vmatpush1.msra.mxu0 0.0
        %486 = vmatprep.subr.mxu0 0.0
        %487 = vmatpush1.msra.mxu0 0.0
        %488 = vmatprep.subr.mxu0 0.0
        %489 = vmatpush1.msra.mxu0 0.0
        %490 = vmatprep.subr.mxu0 0.0
        %491 = vmatpush1.msra.mxu0 0.0
        %492 = vmatprep.subr.mxu0 0.0
        %493 = vmatpush1.msra.mxu0 0.0
        %494 = vmatprep.subr.mxu0 0.0
        %495 = vmatpush1.msra.mxu0 0.0
        %496 = vmatprep.subr.mxu0 0.0
        %497 = vmatpush1.msra.mxu0 0.0
        %498 = vmatprep.subr.mxu0 0.0
        %499 = vmatpush1.msra.mxu0 0.0
        %500 = vmatprep.subr.mxu0 0.0
        %501 = vmatpush1.msra.mxu0 0.0
        %502 = vmatprep.subr.mxu0 0.0
        %503 = vmatpush1.msra.mxu0 0.0
        %504 = vmatprep.subr.mxu0 0.0
        %505 = vmatpush1.msra.mxu0 0.0
        %506 = vmatprep.subr.mxu0 0.0
        %507 = vmatpush1.msra.mxu0 0.0
        %508 = vmatprep.subr.mxu0 0.0
        %509 = vmatpush1.msra.mxu0 0.0
        %510 = vmatprep.subr.mxu0 0.0
        %511 = vmatpush1.msra.mxu0 0.0
        %512 = vmatprep.subr.mxu0 0.0
        %513 = vmatpush1.msra.mxu0 0.0
        %514 = vmatprep.subr.mxu0 0.0
        %515 = vmatpush1.msra.mxu0 0.0
        %516 = vmatprep.subr.mxu0 0.0
        %517 = vmatpush1.msra.mxu0 0.0
        %518 = vmatprep.subr.mxu0 0.0
        %519 = vmatpush1.msra.mxu0 0.0
        %520 = vmatprep.mubr.f32.mxu0 0.0
        %521 = vmatmul.mubr.f32.gmra.mrb[0].mxu0 %v445
        %v522 = vpop.f32.mrb[0].mxu0
        %v523 = vadd.f32 0.0, %v522
        %v524 = vpop.f32.mrb[0].mxu0
        %525 = vmatprep.mubr.f32.mxu0 0.0
        %526 = vmatmul.mubr.f32.gmra.mrb[0].mxu0 %v448
        %v527 = vpop.f32.mrb[0].mxu0
        %v528 = vadd.f32 0.0, %v527
        %v529 = vpop.f32.mrb[0].mxu0
        %530 = vmatprep.mubr.f32.mxu0 0.0
        %531 = vmatmul.mubr.f32.gmra.mrb[0].mxu0 %v451
        %v532 = vpop.f32.mrb[0].mxu0
        %v533 = vadd.f32 0.0, %v532
        %v534 = vpop.f32.mrb[0].mxu0
        %535 = vmatprep.mubr.f32.mxu0 0.0
        %536 = vmatmul.mubr.f32.gmra.mrb[0].mxu0 %v454
        %v537 = vpop.f32.mrb[0].mxu0
        %v538 = vadd.f32 0.0, %v537
        %v539 = vpop.f32.mrb[0].mxu0
        %540 = vdwg.mxu0
        %vm541 = vcmask 523264
        %v543 = vsel %vm541, %v523, 0
        %v546 = vsel %vm541, %v528, 0
        %548 = vmatprep.subr.mxu0 0.0
        %549 = vmatpush1.msra.mxu0 %v383
        %550 = vmatprep.subr.mxu0 0.0
        %551 = vmatpush1.msra.mxu0 %v384
        %552 = vmatprep.subr.mxu0 0.0
        %553 = vmatpush1.msra.mxu0 %v385
        %554 = vmatprep.subr.mxu0 0.0
        %555 = vmatpush1.msra.mxu0 %v386
        %556 = vmatprep.subr.mxu0 0.0
        %557 = vmatpush1.msra.mxu0 %v387
        %558 = vmatprep.subr.mxu0 0.0
        %559 = vmatpush1.msra.mxu0 %v388
        %560 = vmatprep.subr.mxu0 0.0
        %561 = vmatpush1.msra.mxu0 %v389
        %562 = vmatprep.subr.mxu0 0.0
        %563 = vmatpush1.msra.mxu0 %v390
        %564 = vmatprep.subr.mxu0 0.0
        %565 = vmatpush1.msra.mxu0 0.0
        %566 = vmatprep.subr.mxu0 0.0
        %567 = vmatpush1.msra.mxu0 0.0
        %568 = vmatprep.subr.mxu0 0.0
        %569 = vmatpush1.msra.mxu0 0.0
        %570 = vmatprep.subr.mxu0 0.0
        %571 = vmatpush1.msra.mxu0 0.0
        %572 = vmatprep.subr.mxu0 0.0
        %573 = vmatpush1.msra.mxu0 0.0
        %574 = vmatprep.subr.mxu0 0.0
        %575 = vmatpush1.msra.mxu0 0.0
        %576 = vmatprep.subr.mxu0 0.0
        %577 = vmatpush1.msra.mxu0 0.0
        %578 = vmatprep.subr.mxu0 0.0
        %579 = vmatpush1.msra.mxu0 0.0
        %580 = vmatprep.subr.mxu0 0.0
        %581 = vmatpush1.msra.mxu0 0.0
        %582 = vmatprep.subr.mxu0 0.0
        %583 = vmatpush1.msra.mxu0 0.0
        %584 = vmatprep.subr.mxu0 0.0
        %585 = vmatpush1.msra.mxu0 0.0
        %586 = vmatprep.subr.mxu0 0.0
        %587 = vmatpush1.msra.mxu0 0.0
        %588 = vmatprep.subr.mxu0 0.0
        %589 = vmatpush1.msra.mxu0 0.0
        %590 = vmatprep.subr.mxu0 0.0
        %591 = vmatpush1.msra.mxu0 0.0
        %592 = vmatprep.subr.mxu0 0.0
        %593 = vmatpush1.msra.mxu0 0.0
        %594 = vmatprep.subr.mxu0 0.0
        %595 = vmatpush1.msra.mxu0 0.0
        %596 = vmatprep.subr.mxu0 0.0
        %597 = vmatpush1.msra.mxu0 0.0
        %598 = vmatprep.subr.mxu0 0.0
        %599 = vmatpush1.msra.mxu0 0.0
        %600 = vmatprep.subr.mxu0 0.0
        %601 = vmatpush1.msra.mxu0 0.0
        %602 = vmatprep.subr.mxu0 0.0
        %603 = vmatpush1.msra.mxu0 0.0
        %604 = vmatprep.subr.mxu0 0.0
        %605 = vmatpush1.msra.mxu0 0.0
        %606 = vmatprep.subr.mxu0 0.0
        %607 = vmatpush1.msra.mxu0 0.0
        %608 = vmatprep.subr.mxu0 0.0
        %609 = vmatpush1.msra.mxu0 0.0
        %610 = vmatprep.subr.mxu0 0.0
        %611 = vmatpush1.msra.mxu0 0.0
        %612 = vmatprep.mubr.f32.mxu0 0.0
        %613 = vmatmul.mubr.f32.gmra.mrb[0].mxu0 %v543
        %v614 = vpop.f32.mrb[0].mxu0
        %v615 = vadd.f32 0.0, %v614
        %v616 = vpop.f32.mrb[0].mxu0
        %617 = vmatprep.mubr.f32.mxu0 0.0
        %618 = vmatmul.mubr.f32.gmra.mrb[0].mxu0 %v546
        %v619 = vpop.f32.mrb[0].mxu0
        %v620 = vadd.f32 0.0, %v619
        %v621 = vpop.f32.mrb[0].mxu0
        %622 = vdwg.mxu0
        %v624 = vsel %vm541, %v533, 0
        %v627 = vsel %vm541, %v538, 0
        %629 = vmatprep.subr.mxu0 0.0
        %630 = vmatpush1.msra.mxu0 %v391
        %631 = vmatprep.subr.mxu0 0.0
        %632 = vmatpush1.msra.mxu0 %v392
        %633 = vmatprep.subr.mxu0 0.0
        %634 = vmatpush1.msra.mxu0 %v393
        %635 = vmatprep.subr.mxu0 0.0
        %636 = vmatpush1.msra.mxu0 %v394
        %637 = vmatprep.subr.mxu0 0.0
        %638 = vmatpush1.msra.mxu0 %v395
        %639 = vmatprep.subr.mxu0 0.0
        %640 = vmatpush1.msra.mxu0 %v396
        %641 = vmatprep.subr.mxu0 0.0
        %642 = vmatpush1.msra.mxu0 %v397
        %643 = vmatprep.subr.mxu0 0.0
        %644 = vmatpush1.msra.mxu0 %v398
        %645 = vmatprep.subr.mxu0 0.0
        %646 = vmatpush1.msra.mxu0 0.0
        %647 = vmatprep.subr.mxu0 0.0
        %648 = vmatpush1.msra.mxu0 0.0
        %649 = vmatprep.subr.mxu0 0.0
        %650 = vmatpush1.msra.mxu0 0.0
        %651 = vmatprep.subr.mxu0 0.0
        %652 = vmatpush1.msra.mxu0 0.0
        %653 = vmatprep.subr.mxu0 0.0
        %654 = vmatpush1.msra.mxu0 0.0
        %655 = vmatprep.subr.mxu0 0.0
        %656 = vmatpush1.msra.mxu0 0.0
        %657 = vmatprep.subr.mxu0 0.0
        %658 = vmatpush1.msra.mxu0 0.0
        %659 = vmatprep.subr.mxu0 0.0
        %660 = vmatpush1.msra.mxu0 0.0
        %661 = vmatprep.subr.mxu0 0.0
        %662 = vmatpush1.msra.mxu0 0.0
        %663 = vmatprep.subr.mxu0 0.0
        %664 = vmatpush1.msra.mxu0 0.0
        %665 = vmatprep.subr.mxu0 0.0
        %666 = vmatpush1.msra.mxu0 0.0
        %667 = vmatprep.subr.mxu0 0.0
        %668 = vmatpush1.msra.mxu0 0.0
        %669 = vmatprep.subr.mxu0 0.0
        %670 = vmatpush1.msra.mxu0 0.0
        %671 = vmatprep.subr.mxu0 0.0
        %672 = vmatpush1.msra.mxu0 0.0
        %673 = vmatprep.subr.mxu0 0.0
        %674 = vmatpush1.msra.mxu0 0.0
        %675 = vmatprep.subr.mxu0 0.0
        %676 = vmatpush1.msra.mxu0 0.0
        %677 = vmatprep.subr.mxu0 0.0
        %678 = vmatpush1.msra.mxu0 0.0
        %679 = vmatprep.subr.mxu0 0.0
        %680 = vmatpush1.msra.mxu0 0.0
        %681 = vmatprep.subr.mxu0 0.0
        %682 = vmatpush1.msra.mxu0 0.0
        %683 = vmatprep.subr.mxu0 0.0
        %684 = vmatpush1.msra.mxu0 0.0
        %685 = vmatprep.subr.mxu0 0.0
        %686 = vmatpush1.msra.mxu0 0.0
        %687 = vmatprep.subr.mxu0 0.0
        %688 = vmatpush1.msra.mxu0 0.0
        %689 = vmatprep.subr.mxu0 0.0
        %690 = vmatpush1.msra.mxu0 0.0
        %691 = vmatprep.subr.mxu0 0.0
        %692 = vmatpush1.msra.mxu0 0.0
        %693 = vmatprep.mubr.f32.mxu0 0.0
        %694 = vmatmul.mubr.f32.gmra.mrb[0].mxu0 %v624
        %v695 = vpop.f32.mrb[0].mxu0
        %v696 = vadd.f32 0.0, %v695
        %v697 = vpop.f32.mrb[0].mxu0
        %698 = vmatprep.mubr.f32.mxu0 0.0
        %699 = vmatmul.mubr.f32.gmra.mrb[0].mxu0 %v627
        %v700 = vpop.f32.mrb[0].mxu0
        %v701 = vadd.f32 0.0, %v700
        %v702 = vpop.f32.mrb[0].mxu0
        %703 = vdwg.mxu0
        %v704 = vsub.f32 %v615, %v696
        %v705 = vsub.f32 %v620, %v701
        %706 = vmatprep.subr.mxu0 0.0
        %707 = vmatpush1.msra.mxu0 %v383
        %708 = vmatprep.subr.mxu0 0.0
        %709 = vmatpush1.msra.mxu0 %v384
        %710 = vmatprep.subr.mxu0 0.0
        %711 = vmatpush1.msra.mxu0 %v385
        %712 = vmatprep.subr.mxu0 0.0
        %713 = vmatpush1.msra.mxu0 %v386
        %714 = vmatprep.subr.mxu0 0.0
        %715 = vmatpush1.msra.mxu0 %v387
        %716 = vmatprep.subr.mxu0 0.0
        %717 = vmatpush1.msra.mxu0 %v388
        %718 = vmatprep.subr.mxu0 0.0
        %719 = vmatpush1.msra.mxu0 %v389
        %720 = vmatprep.subr.mxu0 0.0
        %721 = vmatpush1.msra.mxu0 %v390
        %722 = vmatprep.subr.mxu0 0.0
        %723 = vmatpush1.msra.mxu0 0.0
        %724 = vmatprep.subr.mxu0 0.0
        %725 = vmatpush1.msra.mxu0 0.0
        %726 = vmatprep.subr.mxu0 0.0
        %727 = vmatpush1.msra.mxu0 0.0
        %728 = vmatprep.subr.mxu0 0.0
        %729 = vmatpush1.msra.mxu0 0.0
        %730 = vmatprep.subr.mxu0 0.0
        %731 = vmatpush1.msra.mxu0 0.0
        %732 = vmatprep.subr.mxu0 0.0
        %733 = vmatpush1.msra.mxu0 0.0
        %734 = vmatprep.subr.mxu0 0.0
        %735 = vmatpush1.msra.mxu0 0.0
        %736 = vmatprep.subr.mxu0 0.0
        %737 = vmatpush1.msra.mxu0 0.0
        %738 = vmatprep.subr.mxu0 0.0
        %739 = vmatpush1.msra.mxu0 0.0
        %740 = vmatprep.subr.mxu0 0.0
        %741 = vmatpush1.msra.mxu0 0.0
        %742 = vmatprep.subr.mxu0 0.0
        %743 = vmatpush1.msra.mxu0 0.0
        %744 = vmatprep.subr.mxu0 0.0
        %745 = vmatpush1.msra.mxu0 0.0
        %746 = vmatprep.subr.mxu0 0.0
        %747 = vmatpush1.msra.mxu0 0.0
        %748 = vmatprep.subr.mxu0 0.0
        %749 = vmatpush1.msra.mxu0 0.0
        %750 = vmatprep.subr.mxu0 0.0
        %751 = vmatpush1.msra.mxu0 0.0
        %752 = vmatprep.subr.mxu0 0.0
        %753 = vmatpush1.msra.mxu0 0.0
        %754 = vmatprep.subr.mxu0 0.0
        %755 = vmatpush1.msra.mxu0 0.0
        %756 = vmatprep.subr.mxu0 0.0
        %757 = vmatpush1.msra.mxu0 0.0
        %758 = vmatprep.subr.mxu0 0.0
        %759 = vmatpush1.msra.mxu0 0.0
        %760 = vmatprep.subr.mxu0 0.0
        %761 = vmatpush1.msra.mxu0 0.0
        %762 = vmatprep.subr.mxu0 0.0
        %763 = vmatpush1.msra.mxu0 0.0
        %764 = vmatprep.subr.mxu0 0.0
        %765 = vmatpush1.msra.mxu0 0.0
        %766 = vmatprep.subr.mxu0 0.0
        %767 = vmatpush1.msra.mxu0 0.0
        %768 = vmatprep.subr.mxu0 0.0
        %769 = vmatpush1.msra.mxu0 0.0
        %770 = vmatprep.mubr.f32.mxu0 0.0
        %771 = vmatmul.mubr.f32.gmra.mrb[0].mxu0 %v624
        %v772 = vpop.f32.mrb[0].mxu0
        %v773 = vadd.f32 0.0, %v772
        %v774 = vpop.f32.mrb[0].mxu0
        %775 = vmatprep.mubr.f32.mxu0 0.0
        %776 = vmatmul.mubr.f32.gmra.mrb[0].mxu0 %v627
        %v777 = vpop.f32.mrb[0].mxu0
        %v778 = vadd.f32 0.0, %v777
        %v779 = vpop.f32.mrb[0].mxu0
        %780 = vdwg.mxu0
        %781 = vmatprep.subr.mxu0 0.0
        %782 = vmatpush1.msra.mxu0 %v391
        %783 = vmatprep.subr.mxu0 0.0
        %784 = vmatpush1.msra.mxu0 %v392
        %785 = vmatprep.subr.mxu0 0.0
        %786 = vmatpush1.msra.mxu0 %v393
        %787 = vmatprep.subr.mxu0 0.0
        %788 = vmatpush1.msra.mxu0 %v394
        %789 = vmatprep.subr.mxu0 0.0
        %790 = vmatpush1.msra.mxu0 %v395
        %791 = vmatprep.subr.mxu0 0.0
        %792 = vmatpush1.msra.mxu0 %v396
        %793 = vmatprep.subr.mxu0 0.0
        %794 = vmatpush1.msra.mxu0 %v397
        %795 = vmatprep.subr.mxu0 0.0
        %796 = vmatpush1.msra.mxu0 %v398
        %797 = vmatprep.subr.mxu0 0.0
        %798 = vmatpush1.msra.mxu0 0.0
        %799 = vmatprep.subr.mxu0 0.0
        %800 = vmatpush1.msra.mxu0 0.0
        %801 = vmatprep.subr.mxu0 0.0
        %802 = vmatpush1.msra.mxu0 0.0
        %803 = vmatprep.subr.mxu0 0.0
        %804 = vmatpush1.msra.mxu0 0.0
        %805 = vmatprep.subr.mxu0 0.0
        %806 = vmatpush1.msra.mxu0 0.0
        %807 = vmatprep.subr.mxu0 0.0
        %808 = vmatpush1.msra.mxu0 0.0
        %809 = vmatprep.subr.mxu0 0.0
        %810 = vmatpush1.msra.mxu0 0.0
        %811 = vmatprep.subr.mxu0 0.0
        %812 = vmatpush1.msra.mxu0 0.0
        %813 = vmatprep.subr.mxu0 0.0
        %814 = vmatpush1.msra.mxu0 0.0
        %815 = vmatprep.subr.mxu0 0.0
        %816 = vmatpush1.msra.mxu0 0.0
        %817 = vmatprep.subr.mxu0 0.0
        %818 = vmatpush1.msra.mxu0 0.0
        %819 = vmatprep.subr.mxu0 0.0
        %820 = vmatpush1.msra.mxu0 0.0
        %821 = vmatprep.subr.mxu0 0.0
        %822 = vmatpush1.msra.mxu0 0.0
        %823 = vmatprep.subr.mxu0 0.0
        %824 = vmatpush1.msra.mxu0 0.0
        %825 = vmatprep.subr.mxu0 0.0
        %826 = vmatpush1.msra.mxu0 0.0
        %827 = vmatprep.subr.mxu0 0.0
        %828 = vmatpush1.msra.mxu0 0.0
        %829 = vmatprep.subr.mxu0 0.0
        %830 = vmatpush1.msra.mxu0 0.0
        %831 = vmatprep.subr.mxu0 0.0
        %832 = vmatpush1.msra.mxu0 0.0
        %833 = vmatprep.subr.mxu0 0.0
        %834 = vmatpush1.msra.mxu0 0.0
        %835 = vmatprep.subr.mxu0 0.0
        %836 = vmatpush1.msra.mxu0 0.0
        %837 = vmatprep.subr.mxu0 0.0
        %838 = vmatpush1.msra.mxu0 0.0
        %839 = vmatprep.subr.mxu0 0.0
        %840 = vmatpush1.msra.mxu0 0.0
        %841 = vmatprep.subr.mxu0 0.0
        %842 = vmatpush1.msra.mxu0 0.0
        %843 = vmatprep.subr.mxu0 0.0
        %844 = vmatpush1.msra.mxu0 0.0
        %845 = vmatprep.mubr.f32.mxu0 0.0
        %846 = vmatmul.mubr.f32.gmra.mrb[0].mxu0 %v543
        %v847 = vpop.f32.mrb[0].mxu0
        %v848 = vadd.f32 %v773, %v847
        %v849 = vpop.f32.mrb[0].mxu0
        %850 = vmatprep.mubr.f32.mxu0 0.0
        %851 = vmatmul.mubr.f32.gmra.mrb[0].mxu0 %v546
        %v852 = vpop.f32.mrb[0].mxu0
        %v853 = vadd.f32 %v778, %v852
        %v854 = vpop.f32.mrb[0].mxu0
        %855 = vdwg.mxu0
        %v856 = vadd.f32 %v435, %v704
        %v857 = vadd.f32 %v436, %v705
        %v858 = vadd.f32 %v438, %v848
        %v859 = vadd.f32 %v439, %v853
        %v860 = vmul.f32 %v417, %v856
        %v861 = vmul.f32 %v418, %v857
        %v862 = vmul.f32 %v420, %v858
        %v863 = vmul.f32 %v421, %v859
        %v864 = vsub.f32 %v860, %v862
        %v865 = vsub.f32 %v861, %v863
        %v866 = vmul.f32 %v417, %v858
        %v867 = vmul.f32 %v418, %v859
        %v868 = vmul.f32 %v420, %v856
        %v869 = vmul.f32 %v421, %v857
        %v870 = vadd.f32 %v866, %v868
        %v871 = vadd.f32 %v867, %v869
        %v873 = vsel %vm443, %v399, 0
        %875 = vmatprep.subr.mxu0 0.0
        %876 = vmatpush1.msra.mxu0 %v864
        %877 = vmatprep.subr.mxu0 0.0
        %878 = vmatpush1.msra.mxu0 %v865
        %879 = vmatprep.subr.mxu0 0.0
        %880 = vmatpush1.msra.mxu0 0.0
        %881 = vmatprep.subr.mxu0 0.0
        %882 = vmatpush1.msra.mxu0 0.0
        %883 = vmatprep.subr.mxu0 0.0
        %884 = vmatpush1.msra.mxu0 0.0
        %885 = vmatprep.subr.mxu0 0.0
        %886 = vmatpush1.msra.mxu0 0.0
        %887 = vmatprep.subr.mxu0 0.0
        %888 = vmatpush1.msra.mxu0 0.0
        %889 = vmatprep.subr.mxu0 0.0
        %890 = vmatpush1.msra.mxu0 0.0
        %891 = vmatprep.subr.mxu0 0.0
        %892 = vmatpush1.msra.mxu0 0.0
        %893 = vmatprep.subr.mxu0 0.0
        %894 = vmatpush1.msra.mxu0 0.0
        %895 = vmatprep.subr.mxu0 0.0
        %896 = vmatpush1.msra.mxu0 0.0
        %897 = vmatprep.subr.mxu0 0.0
        %898 = vmatpush1.msra.mxu0 0.0
        %899 = vmatprep.subr.mxu0 0.0
        %900 = vmatpush1.msra.mxu0 0.0
        %901 = vmatprep.subr.mxu0 0.0
        %902 = vmatpush1.msra.mxu0 0.0
        %903 = vmatprep.subr.mxu0 0.0
        %904 = vmatpush1.msra.mxu0 0.0
        %905 = vmatprep.subr.mxu0 0.0
        %906 = vmatpush1.msra.mxu0 0.0
        %907 = vmatprep.subr.mxu0 0.0
        %908 = vmatpush1.msra.mxu0 0.0
        %909 = vmatprep.subr.mxu0 0.0
        %910 = vmatpush1.msra.mxu0 0.0
        %911 = vmatprep.subr.mxu0 0.0
        %912 = vmatpush1.msra.mxu0 0.0
        %913 = vmatprep.subr.mxu0 0.0
        %914 = vmatpush1.msra.mxu0 0.0
        %915 = vmatprep.subr.mxu0 0.0
        %916 = vmatpush1.msra.mxu0 0.0
        %917 = vmatprep.subr.mxu0 0.0
        %918 = vmatpush1.msra.mxu0 0.0
        %919 = vmatprep.subr.mxu0 0.0
        %920 = vmatpush1.msra.mxu0 0.0
        %921 = vmatprep.subr.mxu0 0.0
        %922 = vmatpush1.msra.mxu0 0.0
        %923 = vmatprep.subr.mxu0 0.0
        %924 = vmatpush1.msra.mxu0 0.0
        %925 = vmatprep.subr.mxu0 0.0
        %926 = vmatpush1.msra.mxu0 0.0
        %927 = vmatprep.subr.mxu0 0.0
        %928 = vmatpush1.msra.mxu0 0.0
        %929 = vmatprep.subr.mxu0 0.0
        %930 = vmatpush1.msra.mxu0 0.0
        %931 = vmatprep.subr.mxu0 0.0
        %932 = vmatpush1.msra.mxu0 0.0
        %933 = vmatprep.subr.mxu0 0.0
        %934 = vmatpush1.msra.mxu0 0.0
        %935 = vmatprep.subr.mxu0 0.0
        %936 = vmatpush1.msra.mxu0 0.0
        %937 = vmatprep.subr.mxu0 0.0
        %938 = vmatpush1.msra.mxu0 0.0
        %939 = vmatprep.mubr.f32.mxu0 0.0
        %940 = vmatmul.mubr.f32.gmra.mrb[0].mxu0 %v873
        %v941 = vpop.f32.mrb[0].mxu0
        %v942 = vadd.f32 0.0, %v941
        %v943 = vpop.f32.mrb[0].mxu0
        %944 = vdwg.mxu0
        %v946 = vsel %vm541, %v942, 0
        %948 = vmatprep.subr.mxu0 0.0
        %949 = vmatpush1.msra.mxu0 %v402
        %950 = vmatprep.subr.mxu0 0.0
        %951 = vmatpush1.msra.mxu0 %v403
        %952 = vmatprep.subr.mxu0 0.0
        %953 = vmatpush1.msra.mxu0 %v404
        %954 = vmatprep.subr.mxu0 0.0
        %955 = vmatpush1.msra.mxu0 %v405
        %956 = vmatprep.subr.mxu0 0.0
        %957 = vmatpush1.msra.mxu0 %v406
        %958 = vmatprep.subr.mxu0 0.0
        %959 = vmatpush1.msra.mxu0 %v407
        %960 = vmatprep.subr.mxu0 0.0
        %961 = vmatpush1.msra.mxu0 %v408
        %962 = vmatprep.subr.mxu0 0.0
        %963 = vmatpush1.msra.mxu0 %v409
        %964 = vmatprep.subr.mxu0 0.0
        %965 = vmatpush1.msra.mxu0 0.0
        %966 = vmatprep.subr.mxu0 0.0
        %967 = vmatpush1.msra.mxu0 0.0
        %968 = vmatprep.subr.mxu0 0.0
        %969 = vmatpush1.msra.mxu0 0.0
        %970 = vmatprep.subr.mxu0 0.0
        %971 = vmatpush1.msra.mxu0 0.0
        %972 = vmatprep.subr.mxu0 0.0
        %973 = vmatpush1.msra.mxu0 0.0
        %974 = vmatprep.subr.mxu0 0.0
        %975 = vmatpush1.msra.mxu0 0.0
        %976 = vmatprep.subr.mxu0 0.0
        %977 = vmatpush1.msra.mxu0 0.0
        %978 = vmatprep.subr.mxu0 0.0
        %979 = vmatpush1.msra.mxu0 0.0
        %980 = vmatprep.subr.mxu0 0.0
        %981 = vmatpush1.msra.mxu0 0.0
        %982 = vmatprep.subr.mxu0 0.0
        %983 = vmatpush1.msra.mxu0 0.0
        %984 = vmatprep.subr.mxu0 0.0
        %985 = vmatpush1.msra.mxu0 0.0
        %986 = vmatprep.subr.mxu0 0.0
        %987 = vmatpush1.msra.mxu0 0.0
        %988 = vmatprep.subr.mxu0 0.0
        %989 = vmatpush1.msra.mxu0 0.0
        %990 = vmatprep.subr.mxu0 0.0
        %991 = vmatpush1.msra.mxu0 0.0
        %992 = vmatprep.subr.mxu0 0.0
        %993 = vmatpush1.msra.mxu0 0.0
        %994 = vmatprep.subr.mxu0 0.0
        %995 = vmatpush1.msra.mxu0 0.0
        %996 = vmatprep.subr.mxu0 0.0
        %997 = vmatpush1.msra.mxu0 0.0
        %998 = vmatprep.subr.mxu0 0.0
        %999 = vmatpush1.msra.mxu0 0.0
        %1000 = vmatprep.subr.mxu0 0.0
        %1001 = vmatpush1.msra.mxu0 0.0
        %1002 = vmatprep.subr.mxu0 0.0
        %1003 = vmatpush1.msra.mxu0 0.0
        %1004 = vmatprep.subr.mxu0 0.0
        %1005 = vmatpush1.msra.mxu0 0.0
        %1006 = vmatprep.subr.mxu0 0.0
        %1007 = vmatpush1.msra.mxu0 0.0
        %1008 = vmatprep.subr.mxu0 0.0
        %1009 = vmatpush1.msra.mxu0 0.0
        %1010 = vmatprep.subr.mxu0 0.0
        %1011 = vmatpush1.msra.mxu0 0.0
        %1012 = vmatprep.mubr.f32.mxu0 0.0
        %1013 = vmatmul.mubr.f32.gmra.mrb[0].mxu0 %v946
        %v1014 = vpop.f32.mrb[0].mxu0
        %v1015 = vadd.f32 0.0, %v1014
        %v1016 = vpop.f32.mrb[0].mxu0
        %1017 = vdwg.mxu0
        %1018 = vmatprep.subr.mxu0 0.0
        %1019 = vmatpush1.msra.mxu0 %v870
        %1020 = vmatprep.subr.mxu0 0.0
        %1021 = vmatpush1.msra.mxu0 %v871
        %1022 = vmatprep.subr.mxu0 0.0
        %1023 = vmatpush1.msra.mxu0 0.0
        %1024 = vmatprep.subr.mxu0 0.0
        %1025 = vmatpush1.msra.mxu0 0.0
        %1026 = vmatprep.subr.mxu0 0.0
        %1027 = vmatpush1.msra.mxu0 0.0
        %1028 = vmatprep.subr.mxu0 0.0
        %1029 = vmatpush1.msra.mxu0 0.0
        %1030 = vmatprep.subr.mxu0 0.0
        %1031 = vmatpush1.msra.mxu0 0.0
        %1032 = vmatprep.subr.mxu0 0.0
        %1033 = vmatpush1.msra.mxu0 0.0
        %1034 = vmatprep.subr.mxu0 0.0
        %1035 = vmatpush1.msra.mxu0 0.0
        %1036 = vmatprep.subr.mxu0 0.0
        %1037 = vmatpush1.msra.mxu0 0.0
        %1038 = vmatprep.subr.mxu0 0.0
        %1039 = vmatpush1.msra.mxu0 0.0
        %1040 = vmatprep.subr.mxu0 0.0
        %1041 = vmatpush1.msra.mxu0 0.0
        %1042 = vmatprep.subr.mxu0 0.0
        %1043 = vmatpush1.msra.mxu0 0.0
        %1044 = vmatprep.subr.mxu0 0.0
        %1045 = vmatpush1.msra.mxu0 0.0
        %1046 = vmatprep.subr.mxu0 0.0
        %1047 = vmatpush1.msra.mxu0 0.0
        %1048 = vmatprep.subr.mxu0 0.0
        %1049 = vmatpush1.msra.mxu0 0.0
        %1050 = vmatprep.subr.mxu0 0.0
        %1051 = vmatpush1.msra.mxu0 0.0
        %1052 = vmatprep.subr.mxu0 0.0
        %1053 = vmatpush1.msra.mxu0 0.0
        %1054 = vmatprep.subr.mxu0 0.0
        %1055 = vmatpush1.msra.mxu0 0.0
        %1056 = vmatprep.subr.mxu0 0.0
        %1057 = vmatpush1.msra.mxu0 0.0
        %1058 = vmatprep.subr.mxu0 0.0
        %1059 = vmatpush1.msra.mxu0 0.0
        %1060 = vmatprep.subr.mxu0 0.0
        %1061 = vmatpush1.msra.mxu0 0.0
        %1062 = vmatprep.subr.mxu0 0.0
        %1063 = vmatpush1.msra.mxu0 0.0
        %1064 = vmatprep.subr.mxu0 0.0
        %1065 = vmatpush1.msra.mxu0 0.0
        %1066 = vmatprep.subr.mxu0 0.0
        %1067 = vmatpush1.msra.mxu0 0.0
        %1068 = vmatprep.subr.mxu0 0.0
        %1069 = vmatpush1.msra.mxu0 0.0
        %1070 = vmatprep.subr.mxu0 0.0
        %1071 = vmatpush1.msra.mxu0 0.0
        %1072 = vmatprep.subr.mxu0 0.0
        %1073 = vmatpush1.msra.mxu0 0.0
        %1074 = vmatprep.subr.mxu0 0.0
        %1075 = vmatpush1.msra.mxu0 0.0
        %1076 = vmatprep.subr.mxu0 0.0
        %1077 = vmatpush1.msra.mxu0 0.0
        %1078 = vmatprep.subr.mxu0 0.0
        %1079 = vmatpush1.msra.mxu0 0.0
        %1080 = vmatprep.subr.mxu0 0.0
        %1081 = vmatpush1.msra.mxu0 0.0
        %1082 = vmatprep.mubr.f32.mxu0 0.0
        %1083 = vmatmul.mubr.f32.gmra.mrb[0].mxu0 %v873
        %v1084 = vpop.f32.mrb[0].mxu0
        %v1085 = vadd.f32 0.0, %v1084
        %v1086 = vpop.f32.mrb[0].mxu0
        %1087 = vdwg.mxu0
        %v1089 = vsel %vm541, %v1085, 0
        %1091 = vmatprep.subr.mxu0 0.0
        %1092 = vmatpush1.msra.mxu0 %v402
        %1093 = vmatprep.subr.mxu0 0.0
        %1094 = vmatpush1.msra.mxu0 %v403
        %1095 = vmatprep.subr.mxu0 0.0
        %1096 = vmatpush1.msra.mxu0 %v404
        %1097 = vmatprep.subr.mxu0 0.0
        %1098 = vmatpush1.msra.mxu0 %v405
        %1099 = vmatprep.subr.mxu0 0.0
        %1100 = vmatpush1.msra.mxu0 %v406
        %1101 = vmatprep.subr.mxu0 0.0
        %1102 = vmatpush1.msra.mxu0 %v407
        %1103 = vmatprep.subr.mxu0 0.0
        %1104 = vmatpush1.msra.mxu0 %v408
        %1105 = vmatprep.subr.mxu0 0.0
        %1106 = vmatpush1.msra.mxu0 %v409
        %1107 = vmatprep.subr.mxu0 0.0
        %1108 = vmatpush1.msra.mxu0 0.0
        %1109 = vmatprep.subr.mxu0 0.0
        %1110 = vmatpush1.msra.mxu0 0.0
        %1111 = vmatprep.subr.mxu0 0.0
        %1112 = vmatpush1.msra.mxu0 0.0
        %1113 = vmatprep.subr.mxu0 0.0
        %1114 = vmatpush1.msra.mxu0 0.0
        %1115 = vmatprep.subr.mxu0 0.0
        %1116 = vmatpush1.msra.mxu0 0.0
        %1117 = vmatprep.subr.mxu0 0.0
        %1118 = vmatpush1.msra.mxu0 0.0
        %1119 = vmatprep.subr.mxu0 0.0
        %1120 = vmatpush1.msra.mxu0 0.0
        %1121 = vmatprep.subr.mxu0 0.0
        %1122 = vmatpush1.msra.mxu0 0.0
        %1123 = vmatprep.subr.mxu0 0.0
        %1124 = vmatpush1.msra.mxu0 0.0
        %1125 = vmatprep.subr.mxu0 0.0
        %1126 = vmatpush1.msra.mxu0 0.0
        %1127 = vmatprep.subr.mxu0 0.0
        %1128 = vmatpush1.msra.mxu0 0.0
        %1129 = vmatprep.subr.mxu0 0.0
        %1130 = vmatpush1.msra.mxu0 0.0
        %1131 = vmatprep.subr.mxu0 0.0
        %1132 = vmatpush1.msra.mxu0 0.0
        %1133 = vmatprep.subr.mxu0 0.0
        %1134 = vmatpush1.msra.mxu0 0.0
        %1135 = vmatprep.subr.mxu0 0.0
        %1136 = vmatpush1.msra.mxu0 0.0
        %1137 = vmatprep.subr.mxu0 0.0
        %1138 = vmatpush1.msra.mxu0 0.0
        %1139 = vmatprep.subr.mxu0 0.0
        %1140 = vmatpush1.msra.mxu0 0.0
        %1141 = vmatprep.subr.mxu0 0.0
        %1142 = vmatpush1.msra.mxu0 0.0
        %1143 = vmatprep.subr.mxu0 0.0
        %1144 = vmatpush1.msra.mxu0 0.0
        %1145 = vmatprep.subr.mxu0 0.0
        %1146 = vmatpush1.msra.mxu0 0.0
        %1147 = vmatprep.subr.mxu0 0.0
        %1148 = vmatpush1.msra.mxu0 0.0
        %1149 = vmatprep.subr.mxu0 0.0
        %1150 = vmatpush1.msra.mxu0 0.0
        %1151 = vmatprep.subr.mxu0 0.0
        %1152 = vmatpush1.msra.mxu0 0.0
        %1153 = vmatprep.subr.mxu0 0.0
        %1154 = vmatpush1.msra.mxu0 0.0
        %1155 = vmatprep.mubr.f32.mxu0 0.0
        %1156 = vmatmul.mubr.f32.gmra.mrb[0].mxu0 %v1089
        %v1157 = vpop.f32.mrb[0].mxu0
        %v1158 = vadd.f32 0.0, %v1157
        %v1159 = vpop.f32.mrb[0].mxu0
        %1160 = vdwg.mxu0
        %1161 = vmatprep.subr.mxu0 0.0
        %1162 = vmatpush1.msra.mxu0 %v429
        %1163 = vmatprep.subr.mxu0 0.0
        %1164 = vmatpush1.msra.mxu0 %v430
        %1165 = vmatprep.subr.mxu0 0.0
        %1166 = vmatpush1.msra.mxu0 0.0
        %1167 = vmatprep.subr.mxu0 0.0
        %1168 = vmatpush1.msra.mxu0 0.0
        %1169 = vmatprep.subr.mxu0 0.0
        %1170 = vmatpush1.msra.mxu0 0.0
        %1171 = vmatprep.subr.mxu0 0.0
        %1172 = vmatpush1.msra.mxu0 0.0
        %1173 = vmatprep.subr.mxu0 0.0
        %1174 = vmatpush1.msra.mxu0 0.0
        %1175 = vmatprep.subr.mxu0 0.0
        %1176 = vmatpush1.msra.mxu0 0.0
        %1177 = vmatprep.subr.mxu0 0.0
        %1178 = vmatpush1.msra.mxu0 0.0
        %1179 = vmatprep.subr.mxu0 0.0
        %1180 = vmatpush1.msra.mxu0 0.0
        %1181 = vmatprep.subr.mxu0 0.0
        %1182 = vmatpush1.msra.mxu0 0.0
        %1183 = vmatprep.subr.mxu0 0.0
        %1184 = vmatpush1.msra.mxu0 0.0
        %1185 = vmatprep.subr.mxu0 0.0
        %1186 = vmatpush1.msra.mxu0 0.0
        %1187 = vmatprep.subr.mxu0 0.0
        %1188 = vmatpush1.msra.mxu0 0.0
        %1189 = vmatprep.subr.mxu0 0.0
        %1190 = vmatpush1.msra.mxu0 0.0
        %1191 = vmatprep.subr.mxu0 0.0
        %1192 = vmatpush1.msra.mxu0 0.0
        %1193 = vmatprep.subr.mxu0 0.0
        %1194 = vmatpush1.msra.mxu0 0.0
        %1195 = vmatprep.subr.mxu0 0.0
        %1196 = vmatpush1.msra.mxu0 0.0
        %1197 = vmatprep.subr.mxu0 0.0
        %1198 = vmatpush1.msra.mxu0 0.0
        %1199 = vmatprep.subr.mxu0 0.0
        %1200 = vmatpush1.msra.mxu0 0.0
        %1201 = vmatprep.subr.mxu0 0.0
        %1202 = vmatpush1.msra.mxu0 0.0
        %1203 = vmatprep.subr.mxu0 0.0
        %1204 = vmatpush1.msra.mxu0 0.0
        %1205 = vmatprep.subr.mxu0 0.0
        %1206 = vmatpush1.msra.mxu0 0.0
        %1207 = vmatprep.subr.mxu0 0.0
        %1208 = vmatpush1.msra.mxu0 0.0
        %1209 = vmatprep.subr.mxu0 0.0
        %1210 = vmatpush1.msra.mxu0 0.0
        %1211 = vmatprep.subr.mxu0 0.0
        %1212 = vmatpush1.msra.mxu0 0.0
        %1213 = vmatprep.subr.mxu0 0.0
        %1214 = vmatpush1.msra.mxu0 0.0
        %1215 = vmatprep.subr.mxu0 0.0
        %1216 = vmatpush1.msra.mxu0 0.0
        %1217 = vmatprep.subr.mxu0 0.0
        %1218 = vmatpush1.msra.mxu0 0.0
        %1219 = vmatprep.subr.mxu0 0.0
        %1220 = vmatpush1.msra.mxu0 0.0
        %1221 = vmatprep.subr.mxu0 0.0
        %1222 = vmatpush1.msra.mxu0 0.0
        %1223 = vmatprep.subr.mxu0 0.0
        %1224 = vmatpush1.msra.mxu0 0.0
        %1225 = vmatprep.mubr.f32.mxu0 0.0
        %1226 = vmatmul.mubr.f32.gmra.mrb[0].mxu0 %v873
        %v1227 = vpop.f32.mrb[0].mxu0
        %v1228 = vadd.f32 0.0, %v1227
        %v1229 = vpop.f32.mrb[0].mxu0
        %1230 = vdwg.mxu0
        %1231 = vmatprep.subr.mxu0 0.0
        %1232 = vmatpush1.msra.mxu0 %v432
        %1233 = vmatprep.subr.mxu0 0.0
        %1234 = vmatpush1.msra.mxu0 %v433
        %1235 = vmatprep.subr.mxu0 0.0
        %1236 = vmatpush1.msra.mxu0 0.0
        %1237 = vmatprep.subr.mxu0 0.0
        %1238 = vmatpush1.msra.mxu0 0.0
        %1239 = vmatprep.subr.mxu0 0.0
        %1240 = vmatpush1.msra.mxu0 0.0
        %1241 = vmatprep.subr.mxu0 0.0
        %1242 = vmatpush1.msra.mxu0 0.0
        %1243 = vmatprep.subr.mxu0 0.0
        %1244 = vmatpush1.msra.mxu0 0.0
        %1245 = vmatprep.subr.mxu0 0.0
        %1246 = vmatpush1.msra.mxu0 0.0
        %1247 = vmatprep.subr.mxu0 0.0
        %1248 = vmatpush1.msra.mxu0 0.0
        %1249 = vmatprep.subr.mxu0 0.0
        %1250 = vmatpush1.msra.mxu0 0.0
        %1251 = vmatprep.subr.mxu0 0.0
        %1252 = vmatpush1.msra.mxu0 0.0
        %1253 = vmatprep.subr.mxu0 0.0
        %1254 = vmatpush1.msra.mxu0 0.0
        %1255 = vmatprep.subr.mxu0 0.0
        %1256 = vmatpush1.msra.mxu0 0.0
        %1257 = vmatprep.subr.mxu0 0.0
        %1258 = vmatpush1.msra.mxu0 0.0
        %1259 = vmatprep.subr.mxu0 0.0
        %1260 = vmatpush1.msra.mxu0 0.0
        %1261 = vmatprep.subr.mxu0 0.0
        %1262 = vmatpush1.msra.mxu0 0.0
        %1263 = vmatprep.subr.mxu0 0.0
        %1264 = vmatpush1.msra.mxu0 0.0
        %1265 = vmatprep.subr.mxu0 0.0
        %1266 = vmatpush1.msra.mxu0 0.0
        %1267 = vmatprep.subr.mxu0 0.0
        %1268 = vmatpush1.msra.mxu0 0.0
        %1269 = vmatprep.subr.mxu0 0.0
        %1270 = vmatpush1.msra.mxu0 0.0
        %1271 = vmatprep.subr.mxu0 0.0
        %1272 = vmatpush1.msra.mxu0 0.0
        %1273 = vmatprep.subr.mxu0 0.0
        %1274 = vmatpush1.msra.mxu0 0.0
        %1275 = vmatprep.subr.mxu0 0.0
        %1276 = vmatpush1.msra.mxu0 0.0
        %1277 = vmatprep.subr.mxu0 0.0
        %1278 = vmatpush1.msra.mxu0 0.0
        %1279 = vmatprep.subr.mxu0 0.0
        %1280 = vmatpush1.msra.mxu0 0.0
        %1281 = vmatprep.subr.mxu0 0.0
        %1282 = vmatpush1.msra.mxu0 0.0
        %1283 = vmatprep.subr.mxu0 0.0
        %1284 = vmatpush1.msra.mxu0 0.0
        %1285 = vmatprep.subr.mxu0 0.0
        %1286 = vmatpush1.msra.mxu0 0.0
        %1287 = vmatprep.subr.mxu0 0.0
        %1288 = vmatpush1.msra.mxu0 0.0
        %1289 = vmatprep.subr.mxu0 0.0
        %1290 = vmatpush1.msra.mxu0 0.0
        %1291 = vmatprep.subr.mxu0 0.0
        %1292 = vmatpush1.msra.mxu0 0.0
        %1293 = vmatprep.subr.mxu0 0.0
        %1294 = vmatpush1.msra.mxu0 0.0
        %1295 = vmatprep.mubr.f32.mxu0 0.0
        %1296 = vmatmul.mubr.f32.gmra.mrb[0].mxu0 %v873
        %v1297 = vpop.f32.mrb[0].mxu0
        %v1298 = vadd.f32 0.0, %v1297
        %v1299 = vpop.f32.mrb[0].mxu0
        %1300 = vdwg.mxu0
        %v1302 = vsel %vm541, %v1298, 0
        %1304 = vmatprep.subr.mxu0 0.0
        %1305 = vmatpush1.msra.mxu0 %v402
        %1306 = vmatprep.subr.mxu0 0.0
        %1307 = vmatpush1.msra.mxu0 %v403
        %1308 = vmatprep.subr.mxu0 0.0
        %1309 = vmatpush1.msra.mxu0 %v404
        %1310 = vmatprep.subr.mxu0 0.0
        %1311 = vmatpush1.msra.mxu0 %v405
        %1312 = vmatprep.subr.mxu0 0.0
        %1313 = vmatpush1.msra.mxu0 %v406
        %1314 = vmatprep.subr.mxu0 0.0
        %1315 = vmatpush1.msra.mxu0 %v407
        %1316 = vmatprep.subr.mxu0 0.0
        %1317 = vmatpush1.msra.mxu0 %v408
        %1318 = vmatprep.subr.mxu0 0.0
        %1319 = vmatpush1.msra.mxu0 %v409
        %1320 = vmatprep.subr.mxu0 0.0
        %1321 = vmatpush1.msra.mxu0 0.0
        %1322 = vmatprep.subr.mxu0 0.0
        %1323 = vmatpush1.msra.mxu0 0.0
        %1324 = vmatprep.subr.mxu0 0.0
        %1325 = vmatpush1.msra.mxu0 0.0
        %1326 = vmatprep.subr.mxu0 0.0
        %1327 = vmatpush1.msra.mxu0 0.0
        %1328 = vmatprep.subr.mxu0 0.0
        %1329 = vmatpush1.msra.mxu0 0.0
        %1330 = vmatprep.subr.mxu0 0.0
        %1331 = vmatpush1.msra.mxu0 0.0
        %1332 = vmatprep.subr.mxu0 0.0
        %1333 = vmatpush1.msra.mxu0 0.0
        %1334 = vmatprep.subr.mxu0 0.0
        %1335 = vmatpush1.msra.mxu0 0.0
        %1336 = vmatprep.subr.mxu0 0.0
        %1337 = vmatpush1.msra.mxu0 0.0
        %1338 = vmatprep.subr.mxu0 0.0
        %1339 = vmatpush1.msra.mxu0 0.0
        %1340 = vmatprep.subr.mxu0 0.0
        %1341 = vmatpush1.msra.mxu0 0.0
        %1342 = vmatprep.subr.mxu0 0.0
        %1343 = vmatpush1.msra.mxu0 0.0
        %1344 = vmatprep.subr.mxu0 0.0
        %1345 = vmatpush1.msra.mxu0 0.0
        %1346 = vmatprep.subr.mxu0 0.0
        %1347 = vmatpush1.msra.mxu0 0.0
        %1348 = vmatprep.subr.mxu0 0.0
        %1349 = vmatpush1.msra.mxu0 0.0
        %1350 = vmatprep.subr.mxu0 0.0
        %1351 = vmatpush1.msra.mxu0 0.0
        %1352 = vmatprep.subr.mxu0 0.0
        %1353 = vmatpush1.msra.mxu0 0.0
        %1354 = vmatprep.subr.mxu0 0.0
        %1355 = vmatpush1.msra.mxu0 0.0
        %1356 = vmatprep.subr.mxu0 0.0
        %1357 = vmatpush1.msra.mxu0 0.0
        %1358 = vmatprep.subr.mxu0 0.0
        %1359 = vmatpush1.msra.mxu0 0.0
        %1360 = vmatprep.subr.mxu0 0.0
        %1361 = vmatpush1.msra.mxu0 0.0
        %1362 = vmatprep.subr.mxu0 0.0
        %1363 = vmatpush1.msra.mxu0 0.0
        %1364 = vmatprep.subr.mxu0 0.0
        %1365 = vmatpush1.msra.mxu0 0.0
        %1366 = vmatprep.subr.mxu0 0.0
        %1367 = vmatpush1.msra.mxu0 0.0
        %1368 = vmatprep.mubr.f32.mxu0 0.0
        %1369 = vmatmul.mubr.f32.gmra.mrb[0].mxu0 %v1302
        %v1370 = vpop.f32.mrb[0].mxu0
        %v1371 = vadd.f32 0.0, %v1370
        %v1372 = vpop.f32.mrb[0].mxu0
        %1373 = vdwg.mxu0
        %s1374 = smul.f32 %s378, 4.0
        %v1375 = vstv %s1374
        %v1377 = vsel %vm541, %v1228, 0
        %1379 = vmatprep.subr.mxu0 0.0
        %1380 = vmatpush1.msra.mxu0 %v402
        %1381 = vmatprep.subr.mxu0 0.0
        %1382 = vmatpush1.msra.mxu0 %v403
        %1383 = vmatprep.subr.mxu0 0.0
        %1384 = vmatpush1.msra.mxu0 %v404
        %1385 = vmatprep.subr.mxu0 0.0
        %1386 = vmatpush1.msra.mxu0 %v405
        %1387 = vmatprep.subr.mxu0 0.0
        %1388 = vmatpush1.msra.mxu0 %v406
        %1389 = vmatprep.subr.mxu0 0.0
        %1390 = vmatpush1.msra.mxu0 %v407
        %1391 = vmatprep.subr.mxu0 0.0
        %1392 = vmatpush1.msra.mxu0 %v408
        %1393 = vmatprep.subr.mxu0 0.0
        %1394 = vmatpush1.msra.mxu0 %v409
        %1395 = vmatprep.subr.mxu0 0.0
        %1396 = vmatpush1.msra.mxu0 0.0
        %1397 = vmatprep.subr.mxu0 0.0
        %1398 = vmatpush1.msra.mxu0 0.0
        %1399 = vmatprep.subr.mxu0 0.0
        %1400 = vmatpush1.msra.mxu0 0.0
        %1401 = vmatprep.subr.mxu0 0.0
        %1402 = vmatpush1.msra.mxu0 0.0
        %1403 = vmatprep.subr.mxu0 0.0
        %1404 = vmatpush1.msra.mxu0 0.0
        %1405 = vmatprep.subr.mxu0 0.0
        %1406 = vmatpush1.msra.mxu0 0.0
        %1407 = vmatprep.subr.mxu0 0.0
        %1408 = vmatpush1.msra.mxu0 0.0
        %1409 = vmatprep.subr.mxu0 0.0
        %1410 = vmatpush1.msra.mxu0 0.0
        %1411 = vmatprep.subr.mxu0 0.0
        %1412 = vmatpush1.msra.mxu0 0.0
        %1413 = vmatprep.subr.mxu0 0.0
        %1414 = vmatpush1.msra.mxu0 0.0
        %1415 = vmatprep.subr.mxu0 0.0
        %1416 = vmatpush1.msra.mxu0 0.0
        %1417 = vmatprep.subr.mxu0 0.0
        %1418 = vmatpush1.msra.mxu0 0.0
        %1419 = vmatprep.subr.mxu0 0.0
        %1420 = vmatpush1.msra.mxu0 0.0
        %1421 = vmatprep.subr.mxu0 0.0
        %1422 = vmatpush1.msra.mxu0 0.0
        %1423 = vmatprep.subr.mxu0 0.0
        %1424 = vmatpush1.msra.mxu0 0.0
        %1425 = vmatprep.subr.mxu0 0.0
        %1426 = vmatpush1.msra.mxu0 0.0
        %1427 = vmatprep.subr.mxu0 0.0
        %1428 = vmatpush1.msra.mxu0 0.0
        %1429 = vmatprep.subr.mxu0 0.0
        %1430 = vmatpush1.msra.mxu0 0.0
        %1431 = vmatprep.subr.mxu0 0.0
        %1432 = vmatpush1.msra.mxu0 0.0
        %1433 = vmatprep.subr.mxu0 0.0
        %1434 = vmatpush1.msra.mxu0 0.0
        %1435 = vmatprep.subr.mxu0 0.0
        %1436 = vmatpush1.msra.mxu0 0.0
        %1437 = vmatprep.subr.mxu0 0.0
        %1438 = vmatpush1.msra.mxu0 0.0
        %1439 = vmatprep.subr.mxu0 0.0
        %1440 = vmatpush1.msra.mxu0 0.0
        %1441 = vmatprep.subr.mxu0 0.0
        %1442 = vmatpush1.msra.mxu0 0.0
        %1443 = vmatprep.mubr.f32.mxu0 0.0
        %1444 = vmatmul.mubr.f32.gmra.mrb[0].mxu0 %v1377
        %v1445 = vpop.f32.mrb[0].mxu0
        %v1446 = vadd.f32 %v1375, %v1445
        %v1447 = vpop.f32.mrb[0].mxu0
        %1448 = vdwg.mxu0
        %v1449 = vmul.f32 %v1446, %v1446
        %v1450 = vmul.f32 %v1371, %v1371
        %v1451 = vadd.f32 %v1449, %v1450
        %v1452 = vrcp.pop %v1451
        %v1453 = vmul.f32 1.0, %v1452
        %v1454 = vmul.f32 %v1015, %v1446
        %v1455 = vmul.f32 %v1158, %v1371
        %v1456 = vadd.f32 %v1454, %v1455
        %v1457 = vmul.f32 %v1456, %v1453
        %v1458 = vmul.f32 %v1158, %v1446
        %v1459 = vmul.f32 %v1015, %v1371
        %v1460 = vsub.f32 %v1458, %v1459
        %v1461 = vmul.f32 %v1460, %v1453
        %vm1462 = vcmask 64512
        %v1464 = vsel %vm1462, %v400, 0
        %v1467 = vsel %vm1462, %v401, 0
        %1469 = vmatprep.subr.mxu0 0.0
        %1470 = vmatpush1.msra.mxu0 %v1457
        %1471 = vmatprep.subr.mxu0 0.0
        %1472 = vmatpush1.msra.mxu0 0.0
        %1473 = vmatprep.subr.mxu0 0.0
        %1474 = vmatpush1.msra.mxu0 0.0
        %1475 = vmatprep.subr.mxu0 0.0
        %1476 = vmatpush1.msra.mxu0 0.0
        %1477 = vmatprep.subr.mxu0 0.0
        %1478 = vmatpush1.msra.mxu0 0.0
        %1479 = vmatprep.subr.mxu0 0.0
        %1480 = vmatpush1.msra.mxu0 0.0
        %1481 = vmatprep.subr.mxu0 0.0
        %1482 = vmatpush1.msra.mxu0 0.0
        %1483 = vmatprep.subr.mxu0 0.0
        %1484 = vmatpush1.msra.mxu0 0.0
        %1485 = vmatprep.subr.mxu0 0.0
        %1486 = vmatpush1.msra.mxu0 0.0
        %1487 = vmatprep.subr.mxu0 0.0
        %1488 = vmatpush1.msra.mxu0 0.0
        %1489 = vmatprep.subr.mxu0 0.0
        %1490 = vmatpush1.msra.mxu0 0.0
        %1491 = vmatprep.subr.mxu0 0.0
        %1492 = vmatpush1.msra.mxu0 0.0
        %1493 = vmatprep.subr.mxu0 0.0
        %1494 = vmatpush1.msra.mxu0 0.0
        %1495 = vmatprep.subr.mxu0 0.0
        %1496 = vmatpush1.msra.mxu0 0.0
        %1497 = vmatprep.subr.mxu0 0.0
        %1498 = vmatpush1.msra.mxu0 0.0
        %1499 = vmatprep.subr.mxu0 0.0
        %1500 = vmatpush1.msra.mxu0 0.0
        %1501 = vmatprep.subr.mxu0 0.0
        %1502 = vmatpush1.msra.mxu0 0.0
        %1503 = vmatprep.subr.mxu0 0.0
        %1504 = vmatpush1.msra.mxu0 0.0
        %1505 = vmatprep.subr.mxu0 0.0
        %1506 = vmatpush1.msra.mxu0 0.0
        %1507 = vmatprep.subr.mxu0 0.0
        %1508 = vmatpush1.msra.mxu0 0.0
        %1509 = vmatprep.subr.mxu0 0.0
        %1510 = vmatpush1.msra.mxu0 0.0
        %1511 = vmatprep.subr.mxu0 0.0
        %1512 = vmatpush1.msra.mxu0 0.0
        %1513 = vmatprep.subr.mxu0 0.0
        %1514 = vmatpush1.msra.mxu0 0.0
        %1515 = vmatprep.subr.mxu0 0.0
        %1516 = vmatpush1.msra.mxu0 0.0
        %1517 = vmatprep.subr.mxu0 0.0
        %1518 = vmatpush1.msra.mxu0 0.0
        %1519 = vmatprep.subr.mxu0 0.0
        %1520 = vmatpush1.msra.mxu0 0.0
        %1521 = vmatprep.subr.mxu0 0.0
        %1522 = vmatpush1.msra.mxu0 0.0
        %1523 = vmatprep.subr.mxu0 0.0
        %1524 = vmatpush1.msra.mxu0 0.0
        %1525 = vmatprep.subr.mxu0 0.0
        %1526 = vmatpush1.msra.mxu0 0.0
        %1527 = vmatprep.subr.mxu0 0.0
        %1528 = vmatpush1.msra.mxu0 0.0
        %1529 = vmatprep.subr.mxu0 0.0
        %1530 = vmatpush1.msra.mxu0 0.0
        %1531 = vmatprep.subr.mxu0 0.0
        %1532 = vmatpush1.msra.mxu0 0.0
        %1533 = vmatprep.mubr.f32.mxu0 0.0
        %1534 = vmatmul.mubr.f32.gmra.mrb[0].mxu0 %v1464
        %v1535 = vpop.f32.mrb[0].mxu0
        %v1536 = vadd.f32 0.0, %v1535
        %v1537 = vpop.f32.mrb[0].mxu0
        %1538 = vmatprep.mubr.f32.mxu0 0.0
        %1539 = vmatmul.mubr.f32.gmra.mrb[0].mxu0 %v1467
        %v1540 = vpop.f32.mrb[0].mxu0
        %v1541 = vadd.f32 0.0, %v1540
        %v1542 = vpop.f32.mrb[0].mxu0
        %1543 = vdwg.mxu0
        %vm1544 = vcmask 261120
        %v1546 = vsel %vm1544, %v1536, 0
        %v1549 = vsel %vm1544, %v1541, 0
        %1551 = vmatprep.subr.mxu0 0.0
        %1552 = vmatpush1.msra.mxu0 %v410
        %1553 = vmatprep.subr.mxu0 0.0
        %1554 = vmatpush1.msra.mxu0 %v411
        %1555 = vmatprep.subr.mxu0 0.0
        %1556 = vmatpush1.msra.mxu0 %v412
        %1557 = vmatprep.subr.mxu0 0.0
        %1558 = vmatpush1.msra.mxu0 %v413
        %1559 = vmatprep.subr.mxu0 0.0
        %1560 = vmatpush1.msra.mxu0 0.0
        %1561 = vmatprep.subr.mxu0 0.0
        %1562 = vmatpush1.msra.mxu0 0.0
        %1563 = vmatprep.subr.mxu0 0.0
        %1564 = vmatpush1.msra.mxu0 0.0
        %1565 = vmatprep.subr.mxu0 0.0
        %1566 = vmatpush1.msra.mxu0 0.0
        %1567 = vmatprep.subr.mxu0 0.0
        %1568 = vmatpush1.msra.mxu0 0.0
        %1569 = vmatprep.subr.mxu0 0.0
        %1570 = vmatpush1.msra.mxu0 0.0
        %1571 = vmatprep.subr.mxu0 0.0
        %1572 = vmatpush1.msra.mxu0 0.0
        %1573 = vmatprep.subr.mxu0 0.0
        %1574 = vmatpush1.msra.mxu0 0.0
        %1575 = vmatprep.subr.mxu0 0.0
        %1576 = vmatpush1.msra.mxu0 0.0
        %1577 = vmatprep.subr.mxu0 0.0
        %1578 = vmatpush1.msra.mxu0 0.0
        %1579 = vmatprep.subr.mxu0 0.0
        %1580 = vmatpush1.msra.mxu0 0.0
        %1581 = vmatprep.subr.mxu0 0.0
        %1582 = vmatpush1.msra.mxu0 0.0
        %1583 = vmatprep.subr.mxu0 0.0
        %1584 = vmatpush1.msra.mxu0 0.0
        %1585 = vmatprep.subr.mxu0 0.0
        %1586 = vmatpush1.msra.mxu0 0.0
        %1587 = vmatprep.subr.mxu0 0.0
        %1588 = vmatpush1.msra.mxu0 0.0
        %1589 = vmatprep.subr.mxu0 0.0
        %1590 = vmatpush1.msra.mxu0 0.0
        %1591 = vmatprep.subr.mxu0 0.0
        %1592 = vmatpush1.msra.mxu0 0.0
        %1593 = vmatprep.subr.mxu0 0.0
        %1594 = vmatpush1.msra.mxu0 0.0
        %1595 = vmatprep.subr.mxu0 0.0
        %1596 = vmatpush1.msra.mxu0 0.0
        %1597 = vmatprep.subr.mxu0 0.0
        %1598 = vmatpush1.msra.mxu0 0.0
        %1599 = vmatprep.subr.mxu0 0.0
        %1600 = vmatpush1.msra.mxu0 0.0
        %1601 = vmatprep.subr.mxu0 0.0
        %1602 = vmatpush1.msra.mxu0 0.0
        %1603 = vmatprep.subr.mxu0 0.0
        %1604 = vmatpush1.msra.mxu0 0.0
        %1605 = vmatprep.subr.mxu0 0.0
        %1606 = vmatpush1.msra.mxu0 0.0
        %1607 = vmatprep.subr.mxu0 0.0
        %1608 = vmatpush1.msra.mxu0 0.0
        %1609 = vmatprep.subr.mxu0 0.0
        %1610 = vmatpush1.msra.mxu0 0.0
        %1611 = vmatprep.subr.mxu0 0.0
        %1612 = vmatpush1.msra.mxu0 0.0
        %1613 = vmatprep.subr.mxu0 0.0
        %1614 = vmatpush1.msra.mxu0 0.0
        %1615 = vmatprep.mubr.f32.mxu0 0.0
        %1616 = vmatmul.mubr.f32.gmra.mrb[0].mxu0 %v1546
        %v1617 = vpop.f32.mrb[0].mxu0
        %v1618 = vadd.f32 0.0, %v1617
        %v1619 = vpop.f32.mrb[0].mxu0
        %1620 = vmatprep.mubr.f32.mxu0 0.0
        %1621 = vmatmul.mubr.f32.gmra.mrb[0].mxu0 %v1549
        %v1622 = vpop.f32.mrb[0].mxu0
        %v1623 = vadd.f32 0.0, %v1622
        %v1624 = vpop.f32.mrb[0].mxu0
        %1625 = vdwg.mxu0
        %1626 = vmatprep.subr.mxu0 0.0
        %1627 = vmatpush1.msra.mxu0 %v1461
        %1628 = vmatprep.subr.mxu0 0.0
        %1629 = vmatpush1.msra.mxu0 0.0
        %1630 = vmatprep.subr.mxu0 0.0
        %1631 = vmatpush1.msra.mxu0 0.0
        %1632 = vmatprep.subr.mxu0 0.0
        %1633 = vmatpush1.msra.mxu0 0.0
        %1634 = vmatprep.subr.mxu0 0.0
        %1635 = vmatpush1.msra.mxu0 0.0
        %1636 = vmatprep.subr.mxu0 0.0
        %1637 = vmatpush1.msra.mxu0 0.0
        %1638 = vmatprep.subr.mxu0 0.0
        %1639 = vmatpush1.msra.mxu0 0.0
        %1640 = vmatprep.subr.mxu0 0.0
        %1641 = vmatpush1.msra.mxu0 0.0
        %1642 = vmatprep.subr.mxu0 0.0
        %1643 = vmatpush1.msra.mxu0 0.0
        %1644 = vmatprep.subr.mxu0 0.0
        %1645 = vmatpush1.msra.mxu0 0.0
        %1646 = vmatprep.subr.mxu0 0.0
        %1647 = vmatpush1.msra.mxu0 0.0
        %1648 = vmatprep.subr.mxu0 0.0
        %1649 = vmatpush1.msra.mxu0 0.0
        %1650 = vmatprep.subr.mxu0 0.0
        %1651 = vmatpush1.msra.mxu0 0.0
        %1652 = vmatprep.subr.mxu0 0.0
        %1653 = vmatpush1.msra.mxu0 0.0
        %1654 = vmatprep.subr.mxu0 0.0
        %1655 = vmatpush1.msra.mxu0 0.0
        %1656 = vmatprep.subr.mxu0 0.0
        %1657 = vmatpush1.msra.mxu0 0.0
        %1658 = vmatprep.subr.mxu0 0.0
        %1659 = vmatpush1.msra.mxu0 0.0
        %1660 = vmatprep.subr.mxu0 0.0
        %1661 = vmatpush1.msra.mxu0 0.0
        %1662 = vmatprep.subr.mxu0 0.0
        %1663 = vmatpush1.msra.mxu0 0.0
        %1664 = vmatprep.subr.mxu0 0.0
        %1665 = vmatpush1.msra.mxu0 0.0
        %1666 = vmatprep.subr.mxu0 0.0
        %1667 = vmatpush1.msra.mxu0 0.0
        %1668 = vmatprep.subr.mxu0 0.0
        %1669 = vmatpush1.msra.mxu0 0.0
        %1670 = vmatprep.subr.mxu0 0.0
        %1671 = vmatpush1.msra.mxu0 0.0
        %1672 = vmatprep.subr.mxu0 0.0
        %1673 = vmatpush1.msra.mxu0 0.0
        %1674 = vmatprep.subr.mxu0 0.0
        %1675 = vmatpush1.msra.mxu0 0.0
        %1676 = vmatprep.subr.mxu0 0.0
        %1677 = vmatpush1.msra.mxu0 0.0
        %1678 = vmatprep.subr.mxu0 0.0
        %1679 = vmatpush1.msra.mxu0 0.0
        %1680 = vmatprep.subr.mxu0 0.0
        %1681 = vmatpush1.msra.mxu0 0.0
        %1682 = vmatprep.subr.mxu0 0.0
        %1683 = vmatpush1.msra.mxu0 0.0
        %1684 = vmatprep.subr.mxu0 0.0
        %1685 = vmatpush1.msra.mxu0 0.0
        %1686 = vmatprep.subr.mxu0 0.0
        %1687 = vmatpush1.msra.mxu0 0.0
        %1688 = vmatprep.subr.mxu0 0.0
        %1689 = vmatpush1.msra.mxu0 0.0
        %1690 = vmatprep.mubr.f32.mxu0 0.0
        %1691 = vmatmul.mubr.f32.gmra.mrb[0].mxu0 %v1464
        %v1692 = vpop.f32.mrb[0].mxu0
        %v1693 = vadd.f32 0.0, %v1692
        %v1694 = vpop.f32.mrb[0].mxu0
        %1695 = vmatprep.mubr.f32.mxu0 0.0
        %1696 = vmatmul.mubr.f32.gmra.mrb[0].mxu0 %v1467
        %v1697 = vpop.f32.mrb[0].mxu0
        %v1698 = vadd.f32 0.0, %v1697
        %v1699 = vpop.f32.mrb[0].mxu0
        %1700 = vdwg.mxu0
        %v1702 = vsel %vm1544, %v1693, 0
        %v1705 = vsel %vm1544, %v1698, 0
        %1707 = vmatprep.subr.mxu0 0.0
        %1708 = vmatpush1.msra.mxu0 %v410
        %1709 = vmatprep.subr.mxu0 0.0
        %1710 = vmatpush1.msra.mxu0 %v411
        %1711 = vmatprep.subr.mxu0 0.0
        %1712 = vmatpush1.msra.mxu0 %v412
        %1713 = vmatprep.subr.mxu0 0.0
        %1714 = vmatpush1.msra.mxu0 %v413
        %1715 = vmatprep.subr.mxu0 0.0
        %1716 = vmatpush1.msra.mxu0 0.0
        %1717 = vmatprep.subr.mxu0 0.0
        %1718 = vmatpush1.msra.mxu0 0.0
        %1719 = vmatprep.subr.mxu0 0.0
        %1720 = vmatpush1.msra.mxu0 0.0
        %1721 = vmatprep.subr.mxu0 0.0
        %1722 = vmatpush1.msra.mxu0 0.0
        %1723 = vmatprep.subr.mxu0 0.0
        %1724 = vmatpush1.msra.mxu0 0.0
        %1725 = vmatprep.subr.mxu0 0.0
        %1726 = vmatpush1.msra.mxu0 0.0
        %1727 = vmatprep.subr.mxu0 0.0
        %1728 = vmatpush1.msra.mxu0 0.0
        %1729 = vmatprep.subr.mxu0 0.0
        %1730 = vmatpush1.msra.mxu0 0.0
        %1731 = vmatprep.subr.mxu0 0.0
        %1732 = vmatpush1.msra.mxu0 0.0
        %1733 = vmatprep.subr.mxu0 0.0
        %1734 = vmatpush1.msra.mxu0 0.0
        %1735 = vmatprep.subr.mxu0 0.0
        %1736 = vmatpush1.msra.mxu0 0.0
        %1737 = vmatprep.subr.mxu0 0.0
        %1738 = vmatpush1.msra.mxu0 0.0
        %1739 = vmatprep.subr.mxu0 0.0
        %1740 = vmatpush1.msra.mxu0 0.0
        %1741 = vmatprep.subr.mxu0 0.0
        %1742 = vmatpush1.msra.mxu0 0.0
        %1743 = vmatprep.subr.mxu0 0.0
        %1744 = vmatpush1.msra.mxu0 0.0
        %1745 = vmatprep.subr.mxu0 0.0
        %1746 = vmatpush1.msra.mxu0 0.0
        %1747 = vmatprep.subr.mxu0 0.0
        %1748 = vmatpush1.msra.mxu0 0.0
        %1749 = vmatprep.subr.mxu0 0.0
        %1750 = vmatpush1.msra.mxu0 0.0
        %1751 = vmatprep.subr.mxu0 0.0
        %1752 = vmatpush1.msra.mxu0 0.0
        %1753 = vmatprep.subr.mxu0 0.0
        %1754 = vmatpush1.msra.mxu0 0.0
        %1755 = vmatprep.subr.mxu0 0.0
        %1756 = vmatpush1.msra.mxu0 0.0
        %1757 = vmatprep.subr.mxu0 0.0
        %1758 = vmatpush1.msra.mxu0 0.0
        %1759 = vmatprep.subr.mxu0 0.0
        %1760 = vmatpush1.msra.mxu0 0.0
        %1761 = vmatprep.subr.mxu0 0.0
        %1762 = vmatpush1.msra.mxu0 0.0
        %1763 = vmatprep.subr.mxu0 0.0
        %1764 = vmatpush1.msra.mxu0 0.0
        %1765 = vmatprep.subr.mxu0 0.0
        %1766 = vmatpush1.msra.mxu0 0.0
        %1767 = vmatprep.subr.mxu0 0.0
        %1768 = vmatpush1.msra.mxu0 0.0
        %1769 = vmatprep.subr.mxu0 0.0
        %1770 = vmatpush1.msra.mxu0 0.0
        %1771 = vmatprep.mubr.f32.mxu0 0.0
        %1772 = vmatmul.mubr.f32.gmra.mrb[0].mxu0 %v1702
        %v1773 = vpop.f32.mrb[0].mxu0
        %v1774 = vadd.f32 0.0, %v1773
        %v1775 = vpop.f32.mrb[0].mxu0
        %1776 = vmatprep.mubr.f32.mxu0 0.0
        %1777 = vmatmul.mubr.f32.gmra.mrb[0].mxu0 %v1705
        %v1778 = vpop.f32.mrb[0].mxu0
        %v1779 = vadd.f32 0.0, %v1778
        %v1780 = vpop.f32.mrb[0].mxu0
        %1781 = vdwg.mxu0
        %v1782 = vmul.f32 %v423, %v1618
        %v1783 = vmul.f32 %v424, %v1623
        %v1784 = vmul.f32 %v426, %v1774
        %v1785 = vmul.f32 %v427, %v1779
        %v1786 = vsub.f32 %v1782, %v1784
        %v1787 = vsub.f32 %v1783, %v1785
        %v1788 = vmul.f32 %v423, %v1774
        %v1789 = vmul.f32 %v424, %v1779
        %v1790 = vmul.f32 %v426, %v1618
        %v1791 = vmul.f32 %v427, %v1623
        %v1792 = vadd.f32 %v1788, %v1790
        %v1793 = vadd.f32 %v1789, %v1791
        %v1794 = vstv %s378
        %v1795 = vrcp.pop %v1794
        %s1796 = vtos %v1795
        %s1797 = smul.f32 0.00390625, %s1796
        %v1798 = vsub.f32 %v856, %v1786
        %v1799 = vsub.f32 %v857, %v1787
        %v1800 = vstv %s1797
        %v1801 = vmul.f32 %v1798, %v1800
        %v1802 = vmul.f32 %v1799, %v1800
        %v1803 = vsub.f32 %v858, %v1792
        %v1804 = vsub.f32 %v859, %v1793
        %v1805 = vmul.f32 %v1803, %v1800
        %v1806 = vmul.f32 %v1804, %v1800
        %1807 = vmatprep.subr.mxu0 0.0
        %1808 = vmatpush1.msra.mxu0 %v1801
        %1809 = vmatprep.subr.mxu0 0.0
        %1810 = vmatpush1.msra.mxu0 %v1802
        %1811 = vmatprep.subr.mxu0 0.0
        %1812 = vmatpush1.msra.mxu0 0.0
        %1813 = vmatprep.subr.mxu0 0.0
        %1814 = vmatpush1.msra.mxu0 0.0
        %1815 = vmatprep.subr.mxu0 0.0
        %1816 = vmatpush1.msra.mxu0 0.0
        %1817 = vmatprep.subr.mxu0 0.0
        %1818 = vmatpush1.msra.mxu0 0.0
        %1819 = vmatprep.subr.mxu0 0.0
        %1820 = vmatpush1.msra.mxu0 0.0
        %1821 = vmatprep.subr.mxu0 0.0
        %1822 = vmatpush1.msra.mxu0 0.0
        %1823 = vmatprep.subr.mxu0 0.0
        %1824 = vmatpush1.msra.mxu0 0.0
        %1825 = vmatprep.subr.mxu0 0.0
        %1826 = vmatpush1.msra.mxu0 0.0
        %1827 = vmatprep.subr.mxu0 0.0
        %1828 = vmatpush1.msra.mxu0 0.0
        %1829 = vmatprep.subr.mxu0 0.0
        %1830 = vmatpush1.msra.mxu0 0.0
        %1831 = vmatprep.subr.mxu0 0.0
        %1832 = vmatpush1.msra.mxu0 0.0
        %1833 = vmatprep.subr.mxu0 0.0
        %1834 = vmatpush1.msra.mxu0 0.0
        %1835 = vmatprep.subr.mxu0 0.0
        %1836 = vmatpush1.msra.mxu0 0.0
        %1837 = vmatprep.subr.mxu0 0.0
        %1838 = vmatpush1.msra.mxu0 0.0
        %1839 = vmatprep.subr.mxu0 0.0
        %1840 = vmatpush1.msra.mxu0 0.0
        %1841 = vmatprep.subr.mxu0 0.0
        %1842 = vmatpush1.msra.mxu0 0.0
        %1843 = vmatprep.subr.mxu0 0.0
        %1844 = vmatpush1.msra.mxu0 0.0
        %1845 = vmatprep.subr.mxu0 0.0
        %1846 = vmatpush1.msra.mxu0 0.0
        %1847 = vmatprep.subr.mxu0 0.0
        %1848 = vmatpush1.msra.mxu0 0.0
        %1849 = vmatprep.subr.mxu0 0.0
        %1850 = vmatpush1.msra.mxu0 0.0
        %1851 = vmatprep.subr.mxu0 0.0
        %1852 = vmatpush1.msra.mxu0 0.0
        %1853 = vmatprep.subr.mxu0 0.0
        %1854 = vmatpush1.msra.mxu0 0.0
        %1855 = vmatprep.subr.mxu0 0.0
        %1856 = vmatpush1.msra.mxu0 0.0
        %1857 = vmatprep.subr.mxu0 0.0
        %1858 = vmatpush1.msra.mxu0 0.0
        %1859 = vmatprep.subr.mxu0 0.0
        %1860 = vmatpush1.msra.mxu0 0.0
        %1861 = vmatprep.subr.mxu0 0.0
        %1862 = vmatpush1.msra.mxu0 0.0
        %1863 = vmatprep.subr.mxu0 0.0
        %1864 = vmatpush1.msra.mxu0 0.0
        %1865 = vmatprep.subr.mxu0 0.0
        %1866 = vmatpush1.msra.mxu0 0.0
        %1867 = vmatprep.subr.mxu0 0.0
        %1868 = vmatpush1.msra.mxu0 0.0
        %1869 = vmatprep.subr.mxu0 0.0
        %1870 = vmatpush1.msra.mxu0 0.0
        %1871 = vmatprep.mubr.f32.mxu0 0.0
        %1872 = vmatmul.mubr.f32.gmra.mrb[0].mxu0 %v445
        %v1873 = vpop.f32.mrb[0].mxu0
        %v1874 = vadd.f32 0.0, %v1873
        %v1875 = vpop.f32.mrb[0].mxu0
        %1876 = vmatprep.mubr.f32.mxu0 0.0
        %1877 = vmatmul.mubr.f32.gmra.mrb[0].mxu0 %v448
        %v1878 = vpop.f32.mrb[0].mxu0
        %v1879 = vadd.f32 0.0, %v1878
        %v1880 = vpop.f32.mrb[0].mxu0
        %1881 = vmatprep.mubr.f32.mxu0 0.0
        %1882 = vmatmul.mubr.f32.gmra.mrb[0].mxu0 %v451
        %v1883 = vpop.f32.mrb[0].mxu0
        %v1884 = vadd.f32 0.0, %v1883
        %v1885 = vpop.f32.mrb[0].mxu0
        %1886 = vmatprep.mubr.f32.mxu0 0.0
        %1887 = vmatmul.mubr.f32.gmra.mrb[0].mxu0 %v454
        %v1888 = vpop.f32.mrb[0].mxu0
        %v1889 = vadd.f32 0.0, %v1888
        %v1890 = vpop.f32.mrb[0].mxu0
        %1891 = vdwg.mxu0
        %1892 = vmatprep.subr.mxu0 0.0
        %1893 = vmatpush1.msra.mxu0 %v1805
        %1894 = vmatprep.subr.mxu0 0.0
        %1895 = vmatpush1.msra.mxu0 %v1806
        %1896 = vmatprep.subr.mxu0 0.0
        %1897 = vmatpush1.msra.mxu0 0.0
        %1898 = vmatprep.subr.mxu0 0.0
        %1899 = vmatpush1.msra.mxu0 0.0
        %1900 = vmatprep.subr.mxu0 0.0
        %1901 = vmatpush1.msra.mxu0 0.0
        %1902 = vmatprep.subr.mxu0 0.0
        %1903 = vmatpush1.msra.mxu0 0.0
        %1904 = vmatprep.subr.mxu0 0.0
        %1905 = vmatpush1.msra.mxu0 0.0
        %1906 = vmatprep.subr.mxu0 0.0
        %1907 = vmatpush1.msra.mxu0 0.0
        %1908 = vmatprep.subr.mxu0 0.0
        %1909 = vmatpush1.msra.mxu0 0.0
        %1910 = vmatprep.subr.mxu0 0.0
        %1911 = vmatpush1.msra.mxu0 0.0
        %1912 = vmatprep.subr.mxu0 0.0
        %1913 = vmatpush1.msra.mxu0 0.0
        %1914 = vmatprep.subr.mxu0 0.0
        %1915 = vmatpush1.msra.mxu0 0.0
        %1916 = vmatprep.subr.mxu0 0.0
        %1917 = vmatpush1.msra.mxu0 0.0
        %1918 = vmatprep.subr.mxu0 0.0
        %1919 = vmatpush1.msra.mxu0 0.0
        %1920 = vmatprep.subr.mxu0 0.0
        %1921 = vmatpush1.msra.mxu0 0.0
        %1922 = vmatprep.subr.mxu0 0.0
        %1923 = vmatpush1.msra.mxu0 0.0
        %1924 = vmatprep.subr.mxu0 0.0
        %1925 = vmatpush1.msra.mxu0 0.0
        %1926 = vmatprep.subr.mxu0 0.0
        %1927 = vmatpush1.msra.mxu0 0.0
        %1928 = vmatprep.subr.mxu0 0.0
        %1929 = vmatpush1.msra.mxu0 0.0
        %1930 = vmatprep.subr.mxu0 0.0
        %1931 = vmatpush1.msra.mxu0 0.0
        %1932 = vmatprep.subr.mxu0 0.0
        %1933 = vmatpush1.msra.mxu0 0.0
        %1934 = vmatprep.subr.mxu0 0.0
        %1935 = vmatpush1.msra.mxu0 0.0
        %1936 = vmatprep.subr.mxu0 0.0
        %1937 = vmatpush1.msra.mxu0 0.0
        %1938 = vmatprep.subr.mxu0 0.0
        %1939 = vmatpush1.msra.mxu0 0.0
        %1940 = vmatprep.subr.mxu0 0.0
        %1941 = vmatpush1.msra.mxu0 0.0
        %1942 = vmatprep.subr.mxu0 0.0
        %1943 = vmatpush1.msra.mxu0 0.0
        %1944 = vmatprep.subr.mxu0 0.0
        %1945 = vmatpush1.msra.mxu0 0.0
        %1946 = vmatprep.subr.mxu0 0.0
        %1947 = vmatpush1.msra.mxu0 0.0
        %1948 = vmatprep.subr.mxu0 0.0
        %1949 = vmatpush1.msra.mxu0 0.0
        %1950 = vmatprep.subr.mxu0 0.0
        %1951 = vmatpush1.msra.mxu0 0.0
        %1952 = vmatprep.subr.mxu0 0.0
        %1953 = vmatpush1.msra.mxu0 0.0
        %1954 = vmatprep.subr.mxu0 0.0
        %1955 = vmatpush1.msra.mxu0 0.0
        %1956 = vmatprep.mubr.f32.mxu0 0.0
        %1957 = vmatmul.mubr.f32.gmra.mrb[0].mxu0 %v445
        %v1958 = vpop.f32.mrb[0].mxu0
        %v1959 = vadd.f32 0.0, %v1958
        %v1960 = vpop.f32.mrb[0].mxu0
        %1961 = vmatprep.mubr.f32.mxu0 0.0
        %1962 = vmatmul.mubr.f32.gmra.mrb[0].mxu0 %v448
        %v1963 = vpop.f32.mrb[0].mxu0
        %v1964 = vadd.f32 0.0, %v1963
        %v1965 = vpop.f32.mrb[0].mxu0
        %1966 = vmatprep.mubr.f32.mxu0 0.0
        %1967 = vmatmul.mubr.f32.gmra.mrb[0].mxu0 %v451
        %v1968 = vpop.f32.mrb[0].mxu0
        %v1969 = vadd.f32 0.0, %v1968
        %v1970 = vpop.f32.mrb[0].mxu0
        %1971 = vmatprep.mubr.f32.mxu0 0.0
        %1972 = vmatmul.mubr.f32.gmra.mrb[0].mxu0 %v454
        %v1973 = vpop.f32.mrb[0].mxu0
        %v1974 = vadd.f32 0.0, %v1973
        %v1975 = vpop.f32.mrb[0].mxu0
        %1976 = vdwg.mxu0
        %v1977 = vadd.f32 %v1874, %v1969
        %v1978 = vadd.f32 %v1879, %v1974
        %v1979 = vsub.f32 %v1959, %v1884
        %v1980 = vsub.f32 %v1964, %v1889
        %v1982 = vsel %vm541, %v1979, 0
        %v1985 = vsel %vm541, %v1980, 0
        %1987 = vmatprep.subr.mxu0 0.0
        %1988 = vmatpush1.msra.mxu0 %v391
        %1989 = vmatprep.subr.mxu0 0.0
        %1990 = vmatpush1.msra.mxu0 %v392
        %1991 = vmatprep.subr.mxu0 0.0
        %1992 = vmatpush1.msra.mxu0 %v393
        %1993 = vmatprep.subr.mxu0 0.0
        %1994 = vmatpush1.msra.mxu0 %v394
        %1995 = vmatprep.subr.mxu0 0.0
        %1996 = vmatpush1.msra.mxu0 %v395
        %1997 = vmatprep.subr.mxu0 0.0
        %1998 = vmatpush1.msra.mxu0 %v396
        %1999 = vmatprep.subr.mxu0 0.0
        %2000 = vmatpush1.msra.mxu0 %v397
        %2001 = vmatprep.subr.mxu0 0.0
        %2002 = vmatpush1.msra.mxu0 %v398
        %2003 = vmatprep.subr.mxu0 0.0
        %2004 = vmatpush1.msra.mxu0 0.0
        %2005 = vmatprep.subr.mxu0 0.0
        %2006 = vmatpush1.msra.mxu0 0.0
        %2007 = vmatprep.subr.mxu0 0.0
        %2008 = vmatpush1.msra.mxu0 0.0
        %2009 = vmatprep.subr.mxu0 0.0
        %2010 = vmatpush1.msra.mxu0 0.0
        %2011 = vmatprep.subr.mxu0 0.0
        %2012 = vmatpush1.msra.mxu0 0.0
        %2013 = vmatprep.subr.mxu0 0.0
        %2014 = vmatpush1.msra.mxu0 0.0
        %2015 = vmatprep.subr.mxu0 0.0
        %2016 = vmatpush1.msra.mxu0 0.0
        %2017 = vmatprep.subr.mxu0 0.0
        %2018 = vmatpush1.msra.mxu0 0.0
        %2019 = vmatprep.subr.mxu0 0.0
        %2020 = vmatpush1.msra.mxu0 0.0
        %2021 = vmatprep.subr.mxu0 0.0
        %2022 = vmatpush1.msra.mxu0 0.0
        %2023 = vmatprep.subr.mxu0 0.0
        %2024 = vmatpush1.msra.mxu0 0.0
        %2025 = vmatprep.subr.mxu0 0.0
        %2026 = vmatpush1.msra.mxu0 0.0
        %2027 = vmatprep.subr.mxu0 0.0
        %2028 = vmatpush1.msra.mxu0 0.0
        %2029 = vmatprep.subr.mxu0 0.0
        %2030 = vmatpush1.msra.mxu0 0.0
        %2031 = vmatprep.subr.mxu0 0.0
        %2032 = vmatpush1.msra.mxu0 0.0
        %2033 = vmatprep.subr.mxu0 0.0
        %2034 = vmatpush1.msra.mxu0 0.0
        %2035 = vmatprep.subr.mxu0 0.0
        %2036 = vmatpush1.msra.mxu0 0.0
        %2037 = vmatprep.subr.mxu0 0.0
        %2038 = vmatpush1.msra.mxu0 0.0
        %2039 = vmatprep.subr.mxu0 0.0
        %2040 = vmatpush1.msra.mxu0 0.0
        %2041 = vmatprep.subr.mxu0 0.0
        %2042 = vmatpush1.msra.mxu0 0.0
        %2043 = vmatprep.subr.mxu0 0.0
        %2044 = vmatpush1.msra.mxu0 0.0
        %2045 = vmatprep.subr.mxu0 0.0
        %2046 = vmatpush1.msra.mxu0 0.0
        %2047 = vmatprep.subr.mxu0 0.0
        %2048 = vmatpush1.msra.mxu0 0.0
        %2049 = vmatprep.subr.mxu0 0.0
        %2050 = vmatpush1.msra.mxu0 0.0
        %2051 = vmatprep.mubr.f32.mxu0 0.0
        %2052 = vmatmul.mubr.f32.gmra.mrb[0].mxu0 %v1982
        %v2053 = vpop.f32.mrb[0].mxu0
        %v2054 = vadd.f32 0.0, %v2053
        %v2055 = vpop.f32.mrb[0].mxu0
        %2056 = vmatprep.mubr.f32.mxu0 0.0
        %2057 = vmatmul.mubr.f32.gmra.mrb[0].mxu0 %v1985
        %v2058 = vpop.f32.mrb[0].mxu0
        %v2059 = vadd.f32 0.0, %v2058
        %v2060 = vpop.f32.mrb[0].mxu0
        %2061 = vdwg.mxu0
        %v2063 = vsel %vm541, %v1977, 0
        %v2066 = vsel %vm541, %v1978, 0
        %2068 = vmatprep.subr.mxu0 0.0
        %2069 = vmatpush1.msra.mxu0 %v383
        %2070 = vmatprep.subr.mxu0 0.0
        %2071 = vmatpush1.msra.mxu0 %v384
        %2072 = vmatprep.subr.mxu0 0.0
        %2073 = vmatpush1.msra.mxu0 %v385
        %2074 = vmatprep.subr.mxu0 0.0
        %2075 = vmatpush1.msra.mxu0 %v386
        %2076 = vmatprep.subr.mxu0 0.0
        %2077 = vmatpush1.msra.mxu0 %v387
        %2078 = vmatprep.subr.mxu0 0.0
        %2079 = vmatpush1.msra.mxu0 %v388
        %2080 = vmatprep.subr.mxu0 0.0
        %2081 = vmatpush1.msra.mxu0 %v389
        %2082 = vmatprep.subr.mxu0 0.0
        %2083 = vmatpush1.msra.mxu0 %v390
        %2084 = vmatprep.subr.mxu0 0.0
        %2085 = vmatpush1.msra.mxu0 0.0
        %2086 = vmatprep.subr.mxu0 0.0
        %2087 = vmatpush1.msra.mxu0 0.0
        %2088 = vmatprep.subr.mxu0 0.0
        %2089 = vmatpush1.msra.mxu0 0.0
        %2090 = vmatprep.subr.mxu0 0.0
        %2091 = vmatpush1.msra.mxu0 0.0
        %2092 = vmatprep.subr.mxu0 0.0
        %2093 = vmatpush1.msra.mxu0 0.0
        %2094 = vmatprep.subr.mxu0 0.0
        %2095 = vmatpush1.msra.mxu0 0.0
        %2096 = vmatprep.subr.mxu0 0.0
        %2097 = vmatpush1.msra.mxu0 0.0
        %2098 = vmatprep.subr.mxu0 0.0
        %2099 = vmatpush1.msra.mxu0 0.0
        %2100 = vmatprep.subr.mxu0 0.0
        %2101 = vmatpush1.msra.mxu0 0.0
        %2102 = vmatprep.subr.mxu0 0.0
        %2103 = vmatpush1.msra.mxu0 0.0
        %2104 = vmatprep.subr.mxu0 0.0
        %2105 = vmatpush1.msra.mxu0 0.0
        %2106 = vmatprep.subr.mxu0 0.0
        %2107 = vmatpush1.msra.mxu0 0.0
        %2108 = vmatprep.subr.mxu0 0.0
        %2109 = vmatpush1.msra.mxu0 0.0
        %2110 = vmatprep.subr.mxu0 0.0
        %2111 = vmatpush1.msra.mxu0 0.0
        %2112 = vmatprep.subr.mxu0 0.0
        %2113 = vmatpush1.msra.mxu0 0.0
        %2114 = vmatprep.subr.mxu0 0.0
        %2115 = vmatpush1.msra.mxu0 0.0
        %2116 = vmatprep.subr.mxu0 0.0
        %2117 = vmatpush1.msra.mxu0 0.0
        %2118 = vmatprep.subr.mxu0 0.0
        %2119 = vmatpush1.msra.mxu0 0.0
        %2120 = vmatprep.subr.mxu0 0.0
        %2121 = vmatpush1.msra.mxu0 0.0
        %2122 = vmatprep.subr.mxu0 0.0
        %2123 = vmatpush1.msra.mxu0 0.0
        %2124 = vmatprep.subr.mxu0 0.0
        %2125 = vmatpush1.msra.mxu0 0.0
        %2126 = vmatprep.subr.mxu0 0.0
        %2127 = vmatpush1.msra.mxu0 0.0
        %2128 = vmatprep.subr.mxu0 0.0
        %2129 = vmatpush1.msra.mxu0 0.0
        %2130 = vmatprep.subr.mxu0 0.0
        %2131 = vmatpush1.msra.mxu0 0.0
        %2132 = vmatprep.mubr.f32.mxu0 0.0
        %2133 = vmatmul.mubr.f32.gmra.mrb[0].mxu0 %v2063
        %v2134 = vpop.f32.mrb[0].mxu0
        %v2135 = vadd.f32 %v2054, %v2134
        %v2136 = vpop.f32.mrb[0].mxu0
        %2137 = vmatprep.mubr.f32.mxu0 0.0
        %2138 = vmatmul.mubr.f32.gmra.mrb[0].mxu0 %v2066
        %v2139 = vpop.f32.mrb[0].mxu0
        %v2140 = vadd.f32 %v2059, %v2139
        %v2141 = vpop.f32.mrb[0].mxu0
        %2142 = vdwg.mxu0
        %2143 = vst.msk [vmem:[%s377] sm:$0xff] %vm541, %v2135
        %2144 = vst.msk [vmem:[%s377 + $0x8] sm:$0xff] %vm541, %v2140
        %s2145 = sand.u32 %s230, 1
        %s2146 = scalar_lea.sflag [#allocation4], %s2145
        %s2147 = sand.u32 %s230, 1
        %s2148 = smul.addr %s2147, 16
        %s2149 = scalar_lea.vmem [#allocation9], %s2148
        // Predicated region
        $region69: #{tpu_custom_call.1} parent=55 // pred_check
          %p2150 = pneg %p240
        $region70: #{tpu_custom_call.1} parent=55 // pred_check_branch
          %2152 = sbr.rel (%p2150) target = $region72
        $region71: #{tpu_custom_call.1} parent=55 // pred_region
          %s2154 = ssub.s32 256, 256
          %2155 = vsyncadd %s2146, %s2154
          %s2156 = smul.addr %s28, 2
          %s2157 = smul.addr %s2156, 128
          %s2158 = scalar_lea.hbm %s9, %s2157
          %s2159 = sshll.u32 %s2149, 4
          %s2160 = int_to_ptr.vmem [resolvable:$true] %s2159
          %2165 = dma.vmem_to_hbm [thread:$0]  %s2160, 256, %s2158, %s2146, 128, 128, 8
        $region72: #{tpu_custom_call.1} parent=55 // pred_fallthru
          _
      $region56: #{tpu_custom_call.1} parent=5 // pred_fallthru
        _
      %p2166 = scmp.le.s32.totalorder 2, %s23
      // Predicated region
      $region73: #{tpu_custom_call.1} parent=5 // pred_check
        %p2167 = pneg %p2166
      $region74: #{tpu_custom_call.1} parent=5 // pred_check_branch
        %2169 = sbr.rel (%p2167) target = $region76
      $region75: #{tpu_custom_call.1} parent=5 // pred_region
        %s2170 = ssub.s32 %s23, 2
        // Predicated region
        $region77: #{tpu_custom_call.1} parent=75 // pred_check
          %p2171 = pneg %p246
        $region78: #{tpu_custom_call.1} parent=75 // pred_check_branch
          %2173 = sbr.rel (%p2171) target = $region80
        $region79: #{tpu_custom_call.1} parent=75 // pred_region
          %s2174 = sand.u32 %s231, 1
          %s2175 = scalar_lea.sflag [#allocation4], %s2174
          %s2176 = sand.u32 %s231, 1
          %s2177 = smul.addr %s2176, 16
          %s2178 = scalar_lea.vmem [#allocation9], %s2177
          %2179 = dma.done %s2175, 256
        $region80: #{tpu_custom_call.1} parent=75 // pred_fallthru
          _
      $region76: #{tpu_custom_call.1} parent=5 // pred_fallthru
        _
    $region6: #{tpu_custom_call.1} parent=1 // loop_footer
      %s27 = sadd.s32 1, %s23
    $region7: #{tpu_custom_call.1} parent=1 // loop_footer_branch
      %22 = sbr.rel target = $region3
    $region8: #{tpu_custom_call.1} parent=1 // loop_exit
      _
    %2180 = vsyncpa [#allocation3], 1
    %s2181 = scalar_lea.sflag [#allocation3], 1
    %2182 = vsyncpa %s2181, 1
    %2183 = vsyncpa [#allocation8], 1
    %2184 = vsyncpa [#allocation4], 1
    %s2185 = scalar_lea.sflag [#allocation4], 1
    %2186 = vsyncpa %s2185, 1
    %2187 = vsyncpa [#allocation5], 1
    %s2188 = scalar_lea.sflag [#allocation5], 1
    %2189 = vsyncpa %s2188, 1

</llo_original>
